<compile_context>
chip_gen: v7x
topology: tpu7x:2x2x1
jax: 0.10.0
libtpu: 0.0.40
codegen_flags: <defaults>
</compile_context>

<pallas_src>
import functools

import jax
import jax.numpy as jnp
from jax.experimental import pallas as pl
from jax.experimental.pallas import tpu as pltpu


# Padded layer sizes (original: 4 -> 100 -> 50 -> 60 -> 1).
PAD_IN = (4, 128, 64, 64)    # K (in-features) of each layer
PAD_OUT = (128, 64, 64, 8)   # M (out-features) of each layer


def _round_up(n, m):
    return ((n + m - 1) // m) * m


def mlp_kernel(x_ref, w1_ref, b1_ref, w2_ref, b2_ref, w3_ref, b3_ref,
               w4_ref, b4_ref, o_ref):
    """Fused forward pass on one batch tile, feature-major layout (batch on lanes).

    x_ref : (4, TB)    bf16
    wN    : (out, in)  bf16  (PyTorch layout, zero-padded, resident in VMEM)
    bN    : (out, 1)   f32   (added to the f32 MXU accumulator)
    o_ref : (1, TB)    f32   (the single real output row)
    """
    x = x_ref[...]

    h = jnp.dot(w1_ref[...], x, preferred_element_type=jnp.float32)        # (128, TB) f32
    h = jnp.maximum(h + b1_ref[...], 0.0).astype(w2_ref.dtype)             # ReLU f32 -> bf16

    h = jnp.dot(w2_ref[...], h, preferred_element_type=jnp.float32)        # (64, TB)
    h = jnp.maximum(h + b2_ref[...], 0.0).astype(w3_ref.dtype)

    h = jnp.dot(w3_ref[...], h, preferred_element_type=jnp.float32)        # (64, TB)
    h = jnp.maximum(h + b3_ref[...], 0.0).astype(w4_ref.dtype)

    h = jnp.dot(w4_ref[...], h, preferred_element_type=jnp.float32) + b4_ref[...]  # (8, TB)
    o_ref[...] = h[0:1, :].astype(o_ref.dtype)                             # lane-dense row 0


@functools.partial(jax.jit, static_argnames=("max_tb",))
def mynet_forward(x, padded_params, *, max_tb=4096):
    """x: [B, 4] float32. Returns [B, 1] float32 (== PyTorch Mynet.forward(x))."""
    w1, b1, w2, b2, w3, b3, w4, b4 = padded_params
    compute_dtype = w1.dtype
    B = x.shape[0]

    # Batch tiling: tb is a multiple of 1024 that divides b_pad; when possible keep
    # >= 2 tiles so v7x's two TensorCores both get a share of the batch.
    b_pad = _round_up(max(B, 1), 1024)
    tb = min(max_tb, b_pad)
    while b_pad % tb:
        tb -= 1024
    if b_pad // tb == 1 and b_pad >= 2048 and (b_pad // 2) % 1024 == 0:
        tb = b_pad // 2
    num_tiles = b_pad // tb

    # Single fused pad + transpose + cast: [B, 4] f32 -> feature-major (4, b_pad) bf16.
    xt = jnp.zeros((PAD_IN[0], b_pad), compute_dtype).at[:, :B].set(x.T.astype(compute_dtype))

    def resident(shape):                       # weights/biases: same block every step
        return pl.BlockSpec(shape, lambda i: (0, 0))

    grid_spec = pltpu.PrefetchScalarGridSpec(
        num_scalar_prefetch=0,
        grid=(num_tiles,),
        in_specs=[
            pl.BlockSpec((PAD_IN[0], tb), lambda i: (0, i)),   # x tile, pipelined over batch
            resident(w1.shape), resident(b1.shape),
            resident(w2.shape), resident(b2.shape),
            resident(w3.shape), resident(b3.shape),
            resident(w4.shape), resident(b4.shape),
        ],
        out_specs=pl.BlockSpec((1, tb), lambda i: (0, i)),
    )

    flops = 2 * b_pad * sum(i * o for i, o in zip(PAD_IN, PAD_OUT))
    param_bytes = sum(int(p.size) * p.dtype.itemsize for p in padded_params)
    bytes_accessed = (int(xt.size) * xt.dtype.itemsize   # x in (bf16)
                      + 4 * b_pad                        # out (f32, 1 real row)
                      + param_bytes)

    out = pl.pallas_call(
        mlp_kernel,
        out_shape=jax.ShapeDtypeStruct((1, b_pad), jnp.float32),
        grid_spec=grid_spec,
        compiler_params=pltpu.CompilerParams(
            dimension_semantics=("parallel",),            # v7x: shard batch tiles over both TCs
            vmem_limit_bytes=32 * 1024 * 1024),
        cost_estimate=pl.CostEstimate(
            flops=flops, transcendentals=0, bytes_accessed=bytes_accessed),
    )(xt, w1, b1, w2, b2, w3, b3, w4, b4)

    return out[0, :B].reshape(B, 1)


def init_linear(key, in_f, out_f):
    """PyTorch default Linear init: U(-1/sqrt(in_f), 1/sqrt(in_f)); weight is (out, in)."""
    kw, kb = jax.random.split(key)
    bound = 1.0 / (in_f ** 0.5)
    w = jax.random.uniform(kw, (out_f, in_f), jnp.float32, -bound, bound)
    b = jax.random.uniform(kb, (out_f,), jnp.float32, -bound, bound)
    return w, b


def pad_params(raw_params, compute_dtype=jnp.bfloat16):
    """Zero-pad every layer to lane/sublane-friendly sizes; weights -> compute_dtype."""
    padded = []
    for (w, b), pi, po in zip(raw_params, PAD_IN, PAD_OUT):
        out_f, in_f = w.shape
        wp = jnp.zeros((po, pi), jnp.float32).at[:out_f, :in_f].set(w)
        bp = jnp.zeros((po, 1), jnp.float32).at[:out_f, 0].set(b)
        padded += [wp.astype(compute_dtype), bp]   # biases stay f32 (added to f32 acc)
    return tuple(padded)


def reference_forward(x, raw_params, compute_dtype=jnp.bfloat16):
    """Pure-JAX reference mirroring the kernel numerics (bf16 operands, f32 accumulate)."""
    h = x
    for i, (w, b) in enumerate(raw_params):
        hq = h.astype(compute_dtype).astype(jnp.float32)
        wq = w.astype(compute_dtype).astype(jnp.float32)
        h = hq @ wq.T + b
        if i < 3:
            h = jnp.maximum(h, 0.0)
    return h.reshape(-1, 1)


if __name__ == "__main__":
    key = jax.random.PRNGKey(0)
    k1, k2, k3, k4, kx = jax.random.split(key, 5)

    # fc = Linear(4,100) -> ReLU -> Linear(100,50) -> ReLU -> Linear(50,60) -> ReLU -> Linear(60,1)
    raw_params = (
        init_linear(k1, 4, 100),
        init_linear(k2, 100, 50),
        init_linear(k3, 50, 60),
        init_linear(k4, 60, 1),
    )
    params = pad_params(raw_params, compute_dtype=jnp.bfloat16)

    # Inputs from the module's usage ...
    x_single = jnp.array([[0.0, 0.5, 15.0, 0.5]], dtype=jnp.float32)
    x_small = jnp.array([[1.0, 0.5, 15.0, 2.0],
                         [1.0, 0.2, 15.0, 0.5],
                         [0.0, 0.2, 12.0, 0.5]], dtype=jnp.float32)
    # ... plus a deterministic larger batch to exercise multiple grid tiles (2 x TB=1024).
    x_big = jax.random.uniform(kx, (1500, 4), jnp.float32, 0.0, 15.0)

    for name, xin in (("single", x_single), ("small", x_small), ("big", x_big)):
        out = mynet_forward(xin, params)
        jax.block_until_ready(out)
        ref = reference_forward(xin, raw_params)
        assert out.shape == (xin.shape[0], 1), (name, out.shape)
        assert jnp.allclose(out, ref, atol=2e-3, rtol=2e-3), (
            name, float(jnp.max(jnp.abs(out - ref))))

    print("KERNEL_OK")
</pallas_src>

<mosaic_0001>
module attributes {stable_mosaic.version = 11 : i64} {
  func.func @mlp_kernel(%arg0: i32, %arg1: memref<4x1024xbf16, #tpu.memory_space<vmem>>, %arg2: memref<128x4xbf16, #tpu.memory_space<vmem>>, %arg3: memref<128x1xf32, #tpu.memory_space<vmem>>, %arg4: memref<64x128xbf16, #tpu.memory_space<vmem>>, %arg5: memref<64x1xf32, #tpu.memory_space<vmem>>, %arg6: memref<64x64xbf16, #tpu.memory_space<vmem>>, %arg7: memref<64x1xf32, #tpu.memory_space<vmem>>, %arg8: memref<8x64xbf16, #tpu.memory_space<vmem>>, %arg9: memref<8x1xf32, #tpu.memory_space<vmem>>, %arg10: memref<1x1024xf32, #tpu.memory_space<vmem>>) attributes {dimension_semantics = [#tpu.dimension_semantics<parallel>], iteration_bounds = array<i64: 1>, scalar_prefetch = 0 : i64, scratch_operands = 0 : i64, tpu.core_type = #tpu.core_type<tc>, window_params = [{transform_indices = @transform_0, window_bounds = array<i64: 4, 1024>}, {pipeline_mode = #tpu.pipeline_mode<synchronous>, transform_indices = @transform_1, window_bounds = array<i64: 128, 4>}, {pipeline_mode = #tpu.pipeline_mode<synchronous>, transform_indices = @transform_2, window_bounds = array<i64: 128, 1>}, {pipeline_mode = #tpu.pipeline_mode<synchronous>, transform_indices = @transform_3, window_bounds = array<i64: 64, 128>}, {pipeline_mode = #tpu.pipeline_mode<synchronous>, transform_indices = @transform_4, window_bounds = array<i64: 64, 1>}, {pipeline_mode = #tpu.pipeline_mode<synchronous>, transform_indices = @transform_5, window_bounds = array<i64: 64, 64>}, {pipeline_mode = #tpu.pipeline_mode<synchronous>, transform_indices = @transform_6, window_bounds = array<i64: 64, 1>}, {pipeline_mode = #tpu.pipeline_mode<synchronous>, transform_indices = @transform_7, window_bounds = array<i64: 8, 64>}, {pipeline_mode = #tpu.pipeline_mode<synchronous>, transform_indices = @transform_8, window_bounds = array<i64: 8, 1>}, {transform_indices = @transform_9, window_bounds = array<i64: 1, 1024>}]} {
    %c0 = arith.constant 0 : index
    %c0_0 = arith.constant 0 : index
    %0 = vector.load %arg1[%c0, %c0_0] : memref<4x1024xbf16, #tpu.memory_space<vmem>>, vector<4x1024xbf16>
    %c0_1 = arith.constant 0 : index
    %c0_2 = arith.constant 0 : index
    %1 = vector.load %arg2[%c0_1, %c0_2] : memref<128x4xbf16, #tpu.memory_space<vmem>>, vector<128x4xbf16>
    %cst = arith.constant dense<0.000000e+00> : vector<128x1024xf32>
    %2 = tpu.matmul %1, %0, %cst {dimension_numbers = #tpu.dot_dimension_numbers<[1], [0], [0], [1], [0, 0, 1, 1], [], []>} : vector<128x4xbf16>, vector<4x1024xbf16>, vector<128x1024xf32> -> vector<128x1024xf32>
    %c0_3 = arith.constant 0 : index
    %c0_4 = arith.constant 0 : index
    %3 = vector.load %arg3[%c0_3, %c0_4] : memref<128x1xf32, #tpu.memory_space<vmem>>, vector<128x1xf32>
    %4 = vector.broadcast %3 : vector<128x1xf32> to vector<128x1024xf32>
    %5 = arith.addf %2, %4 : vector<128x1024xf32>
    %cst_5 = arith.constant 0.000000e+00 : f32
    %6 = vector.broadcast %cst_5 : f32 to vector<128x1024xf32>
    %7 = arith.maximumf %5, %6 : vector<128x1024xf32>
    %8 = arith.truncf %7 : vector<128x1024xf32> to vector<128x1024xbf16>
    %c0_6 = arith.constant 0 : index
    %c0_7 = arith.constant 0 : index
    %9 = vector.load %arg4[%c0_6, %c0_7] : memref<64x128xbf16, #tpu.memory_space<vmem>>, vector<64x128xbf16>
    %cst_8 = arith.constant dense<0.000000e+00> : vector<64x1024xf32>
    %10 = tpu.matmul %9, %8, %cst_8 {dimension_numbers = #tpu.dot_dimension_numbers<[1], [0], [0], [1], [0, 0, 1, 1], [], []>} : vector<64x128xbf16>, vector<128x1024xbf16>, vector<64x1024xf32> -> vector<64x1024xf32>
    %c0_9 = arith.constant 0 : index
    %c0_10 = arith.constant 0 : index
    %11 = vector.load %arg5[%c0_9, %c0_10] : memref<64x1xf32, #tpu.memory_space<vmem>>, vector<64x1xf32>
    %12 = vector.broadcast %11 : vector<64x1xf32> to vector<64x1024xf32>
    %13 = arith.addf %10, %12 : vector<64x1024xf32>
    %cst_11 = arith.constant 0.000000e+00 : f32
    %14 = vector.broadcast %cst_11 : f32 to vector<64x1024xf32>
    %15 = arith.maximumf %13, %14 : vector<64x1024xf32>
    %16 = arith.truncf %15 : vector<64x1024xf32> to vector<64x1024xbf16>
    %c0_12 = arith.constant 0 : index
    %c0_13 = arith.constant 0 : index
    %17 = vector.load %arg6[%c0_12, %c0_13] : memref<64x64xbf16, #tpu.memory_space<vmem>>, vector<64x64xbf16>
    %cst_14 = arith.constant dense<0.000000e+00> : vector<64x1024xf32>
    %18 = tpu.matmul %17, %16, %cst_14 {dimension_numbers = #tpu.dot_dimension_numbers<[1], [0], [0], [1], [0, 0, 1, 1], [], []>} : vector<64x64xbf16>, vector<64x1024xbf16>, vector<64x1024xf32> -> vector<64x1024xf32>
    %c0_15 = arith.constant 0 : index
    %c0_16 = arith.constant 0 : index
    %19 = vector.load %arg7[%c0_15, %c0_16] : memref<64x1xf32, #tpu.memory_space<vmem>>, vector<64x1xf32>
    %20 = vector.broadcast %19 : vector<64x1xf32> to vector<64x1024xf32>
    %21 = arith.addf %18, %20 : vector<64x1024xf32>
    %cst_17 = arith.constant 0.000000e+00 : f32
    %22 = vector.broadcast %cst_17 : f32 to vector<64x1024xf32>
    %23 = arith.maximumf %21, %22 : vector<64x1024xf32>
    %24 = arith.truncf %23 : vector<64x1024xf32> to vector<64x1024xbf16>
    %c0_18 = arith.constant 0 : index
    %c0_19 = arith.constant 0 : index
    %25 = vector.load %arg8[%c0_18, %c0_19] : memref<8x64xbf16, #tpu.memory_space<vmem>>, vector<8x64xbf16>
    %cst_20 = arith.constant dense<0.000000e+00> : vector<8x1024xf32>
    %26 = tpu.matmul %25, %24, %cst_20 {dimension_numbers = #tpu.dot_dimension_numbers<[1], [0], [0], [1], [0, 0, 1, 1], [], []>} : vector<8x64xbf16>, vector<64x1024xbf16>, vector<8x1024xf32> -> vector<8x1024xf32>
    %c0_21 = arith.constant 0 : index
    %c0_22 = arith.constant 0 : index
    %27 = vector.load %arg9[%c0_21, %c0_22] : memref<8x1xf32, #tpu.memory_space<vmem>>, vector<8x1xf32>
    %28 = vector.broadcast %27 : vector<8x1xf32> to vector<8x1024xf32>
    %29 = arith.addf %26, %28 : vector<8x1024xf32>
    %30 = vector.extract_strided_slice %29 {offsets = [0, 0], sizes = [1, 1024], strides = [1, 1]} : vector<8x1024xf32> to vector<1x1024xf32>
    %c0_23 = arith.constant 0 : index
    %c0_24 = arith.constant 0 : index
    %31 = vector.load %arg10[%c0_23, %c0_24] : memref<1x1024xf32, #tpu.memory_space<vmem>>, vector<1x1024xf32>
    tpu.vector_store %arg10[%c0_23, %c0_24], %30 {strides = array<i32>} : memref<1x1024xf32, #tpu.memory_space<vmem>>, vector<1x1024xf32>,
    return
  }
  func.func @transform_0(%arg0: i32) -> (i32, i32) {
    %c0_i32 = arith.constant 0 : i32
    %c0_i32_0 = arith.constant 0 : i32
    return %c0_i32, %arg0 : i32, i32
  }
  func.func @transform_1(%arg0: i32) -> (i32, i32) {
    %c0_i32 = arith.constant 0 : i32
    %c0_i32_0 = arith.constant 0 : i32
    %c0_i32_1 = arith.constant 0 : i32
    return %c0_i32, %c0_i32_0 : i32, i32
  }
  func.func @transform_2(%arg0: i32) -> (i32, i32) {
    %c0_i32 = arith.constant 0 : i32
    %c0_i32_0 = arith.constant 0 : i32
    %c0_i32_1 = arith.constant 0 : i32
    return %c0_i32, %c0_i32_0 : i32, i32
  }
  func.func @transform_3(%arg0: i32) -> (i32, i32) {
    %c0_i32 = arith.constant 0 : i32
    %c0_i32_0 = arith.constant 0 : i32
    %c0_i32_1 = arith.constant 0 : i32
    return %c0_i32, %c0_i32_0 : i32, i32
  }
  func.func @transform_4(%arg0: i32) -> (i32, i32) {
    %c0_i32 = arith.constant 0 : i32
    %c0_i32_0 = arith.constant 0 : i32
    %c0_i32_1 = arith.constant 0 : i32
    return %c0_i32, %c0_i32_0 : i32, i32
  }
  func.func @transform_5(%arg0: i32) -> (i32, i32) {
    %c0_i32 = arith.constant 0 : i32
    %c0_i32_0 = arith.constant 0 : i32
    %c0_i32_1 = arith.constant 0 : i32
    return %c0_i32, %c0_i32_0 : i32, i32
  }
  func.func @transform_6(%arg0: i32) -> (i32, i32) {
    %c0_i32 = arith.constant 0 : i32
    %c0_i32_0 = arith.constant 0 : i32
    %c0_i32_1 = arith.constant 0 : i32
    return %c0_i32, %c0_i32_0 : i32, i32
  }
  func.func @transform_7(%arg0: i32) -> (i32, i32) {
    %c0_i32 = arith.constant 0 : i32
    %c0_i32_0 = arith.constant 0 : i32
    %c0_i32_1 = arith.constant 0 : i32
    return %c0_i32, %c0_i32_0 : i32, i32
  }
  func.func @transform_8(%arg0: i32) -> (i32, i32) {
    %c0_i32 = arith.constant 0 : i32
    %c0_i32_0 = arith.constant 0 : i32
    %c0_i32_1 = arith.constant 0 : i32
    return %c0_i32, %c0_i32_0 : i32, i32
  }
  func.func @transform_9(%arg0: i32) -> (i32, i32) {
    %c0_i32 = arith.constant 0 : i32
    %c0_i32_0 = arith.constant 0 : i32
    return %c0_i32, %arg0 : i32, i32
  }
}

</mosaic_0001>

<llo_original>
// kernel: mynet_forward.1
$region0: #{mynet_forward.1}
  #allocation0 [shape = 'u32[]', space=smem, size = 0x4, offset = 0x4, fixed_abs, tag = 'smem constant byte address 0x4 - core index']
  #allocation1 [shape = 'u32[144,128]{1,0:T(1,128)}', space=vmem, size = 0x12000, scoped, tag = 'internal scratch']
  %s0 = inlined_call_operand.vmem [shape: bf16[4,1024], index: 0, kind: input, shape index: {}]
  %s1 = inlined_call_operand.vmem [shape: bf16[128,4], index: 1, kind: input, shape index: {}]
  %s2 = inlined_call_operand.vmem [shape: f32[128,1], index: 2, kind: input, shape index: {}]
  %s3 = inlined_call_operand.vmem [shape: bf16[64,128], index: 3, kind: input, shape index: {}]
  %s4 = inlined_call_operand.vmem [shape: f32[64,1], index: 4, kind: input, shape index: {}]
  %s5 = inlined_call_operand.vmem [shape: bf16[64,64], index: 5, kind: input, shape index: {}]
  %s6 = inlined_call_operand.vmem [shape: f32[64,1], index: 6, kind: input, shape index: {}]
  %s7 = inlined_call_operand.vmem [shape: bf16[8,64], index: 7, kind: input, shape index: {}]
  %s8 = inlined_call_operand.vmem [shape: f32[8,1], index: 8, kind: input, shape index: {}]
  %s9 = inlined_call_operand.vmem [shape: f32[1,1024], index: 9, kind: output, shape index: {}]
  %s10 = sld [smem:[#allocation0]]
  $region46: #{mynet_forward.1} parent=0
    _
  %s12 = ssub.s32 1, %s10
  %s13 = scalar_select 0, %s12, %s10
  // Predicated region
  $region2: #{mynet_forward.1} parent=0 // pred_check
    _
  $region3: #{mynet_forward.1} parent=0 // pred_check_branch
    %15 = sbr.rel (0) target = $region5
  $region4: #{mynet_forward.1} parent=0 // pred_region
    _
  $region5: #{mynet_forward.1} parent=0 // pred_fallthru
    _
  // Predicated region
  $region6: #{mynet_forward.1} parent=0 // pred_check
    _
  $region7: #{mynet_forward.1} parent=0 // pred_check_branch
    %17 = sbr.rel (0) target = $region9
  $region8: #{mynet_forward.1} parent=0 // pred_region
    _
  $region9: #{mynet_forward.1} parent=0 // pred_fallthru
    _
  // Predicated region
  $region10: #{mynet_forward.1} parent=0 // pred_check
    _
  $region11: #{mynet_forward.1} parent=0 // pred_check_branch
    %19 = sbr.rel (0) target = $region13
  $region12: #{mynet_forward.1} parent=0 // pred_region
    _
  $region13: #{mynet_forward.1} parent=0 // pred_fallthru
    _
  // Predicated region
  $region14: #{mynet_forward.1} parent=0 // pred_check
    _
  $region15: #{mynet_forward.1} parent=0 // pred_check_branch
    %21 = sbr.rel (0) target = $region17
  $region16: #{mynet_forward.1} parent=0 // pred_region
    _
  $region17: #{mynet_forward.1} parent=0 // pred_fallthru
    _
  // Predicated region
  $region18: #{mynet_forward.1} parent=0 // pred_check
    _
  $region19: #{mynet_forward.1} parent=0 // pred_check_branch
    %23 = sbr.rel (0) target = $region21
  $region20: #{mynet_forward.1} parent=0 // pred_region
    _
  $region21: #{mynet_forward.1} parent=0 // pred_fallthru
    _
  // Predicated region
  $region22: #{mynet_forward.1} parent=0 // pred_check
    _
  $region23: #{mynet_forward.1} parent=0 // pred_check_branch
    %25 = sbr.rel (0) target = $region25
  $region24: #{mynet_forward.1} parent=0 // pred_region
    _
  $region25: #{mynet_forward.1} parent=0 // pred_fallthru
    _
  // Predicated region
  $region26: #{mynet_forward.1} parent=0 // pred_check
    _
  $region27: #{mynet_forward.1} parent=0 // pred_check_branch
    %27 = sbr.rel (0) target = $region29
  $region28: #{mynet_forward.1} parent=0 // pred_region
    _
  $region29: #{mynet_forward.1} parent=0 // pred_fallthru
    _
  // Predicated region
  $region30: #{mynet_forward.1} parent=0 // pred_check
    _
  $region31: #{mynet_forward.1} parent=0 // pred_check_branch
    %29 = sbr.rel (0) target = $region33
  $region32: #{mynet_forward.1} parent=0 // pred_region
    _
  $region33: #{mynet_forward.1} parent=0 // pred_fallthru
    _
  // Predicated region
  $region34: #{mynet_forward.1} parent=0 // pred_check
    _
  $region35: #{mynet_forward.1} parent=0 // pred_check_branch
    %31 = sbr.rel (0) target = $region37
  $region36: #{mynet_forward.1} parent=0 // pred_region
    _
  $region37: #{mynet_forward.1} parent=0 // pred_fallthru
    _
  %v33 = vld [vmem:[%s0] sm:$0xff]
  %v34 = vld [vmem:[%s0 + $0x8] sm:$0xff]
  %v35 = vld [vmem:[%s1] sm:$0xf]
  %v36 = vld [vmem:[%s1 + $0x4] sm:$0xf]
  %v37 = vld [vmem:[%s1 + $0x8] sm:$0xf]
  %v38 = vld [vmem:[%s1 + $0xc] sm:$0xf]
  %v39 = vld [vmem:[%s1 + $0x10] sm:$0xf]
  %v40 = vld [vmem:[%s1 + $0x14] sm:$0xf]
  %v41 = vld [vmem:[%s1 + $0x18] sm:$0xf]
  %v42 = vld [vmem:[%s1 + $0x1c] sm:$0xf]
  %v43 = vld [vmem:[%s1 + $0x20] sm:$0xf]
  %v44 = vld [vmem:[%s1 + $0x24] sm:$0xf]
  %v45 = vld [vmem:[%s1 + $0x28] sm:$0xf]
  %v46 = vld [vmem:[%s1 + $0x2c] sm:$0xf]
  %v47 = vld [vmem:[%s1 + $0x30] sm:$0xf]
  %v48 = vld [vmem:[%s1 + $0x34] sm:$0xf]
  %v49 = vld [vmem:[%s1 + $0x38] sm:$0xf]
  %v50 = vld [vmem:[%s1 + $0x3c] sm:$0xf]
  %v51 = vld [vmem:[%s2] sm:$0xff]
  %v52 = vld [vmem:[%s2 + $0x8] sm:$0xff]
  %v53 = vld [vmem:[%s2 + $0x10] sm:$0xff]
  %v54 = vld [vmem:[%s2 + $0x18] sm:$0xff]
  %v55 = vld [vmem:[%s2 + $0x20] sm:$0xff]
  %v56 = vld [vmem:[%s2 + $0x28] sm:$0xff]
  %v57 = vld [vmem:[%s2 + $0x30] sm:$0xff]
  %v58 = vld [vmem:[%s2 + $0x38] sm:$0xff]
  %v59 = vld [vmem:[%s2 + $0x40] sm:$0xff]
  %v60 = vld [vmem:[%s2 + $0x48] sm:$0xff]
  %v61 = vld [vmem:[%s2 + $0x50] sm:$0xff]
  %v62 = vld [vmem:[%s2 + $0x58] sm:$0xff]
  %v63 = vld [vmem:[%s2 + $0x60] sm:$0xff]
  %v64 = vld [vmem:[%s2 + $0x68] sm:$0xff]
  %v65 = vld [vmem:[%s2 + $0x70] sm:$0xff]
  %v66 = vld [vmem:[%s2 + $0x78] sm:$0xff]
  %68 = vset.pattern.permute.xlu0 0
  %69 = vperm.xlu0 %68, %v51
  %v70 = vpop.permute.xlu0 %69
  %73 = vset.pattern.permute.xlu0 0
  %74 = vperm.xlu0 %73, %v52
  %v75 = vpop.permute.xlu0 %74
  %78 = vset.pattern.permute.xlu0 0
  %79 = vperm.xlu0 %78, %v53
  %v80 = vpop.permute.xlu0 %79
  %83 = vset.pattern.permute.xlu0 0
  %84 = vperm.xlu0 %83, %v54
  %v85 = vpop.permute.xlu0 %84
  %88 = vset.pattern.permute.xlu0 0
  %89 = vperm.xlu0 %88, %v55
  %v90 = vpop.permute.xlu0 %89
  %93 = vset.pattern.permute.xlu0 0
  %94 = vperm.xlu0 %93, %v56
  %v95 = vpop.permute.xlu0 %94
  %98 = vset.pattern.permute.xlu0 0
  %99 = vperm.xlu0 %98, %v57
  %v100 = vpop.permute.xlu0 %99
  %103 = vset.pattern.permute.xlu0 0
  %104 = vperm.xlu0 %103, %v58
  %v105 = vpop.permute.xlu0 %104
  %108 = vset.pattern.permute.xlu0 0
  %109 = vperm.xlu0 %108, %v59
  %v110 = vpop.permute.xlu0 %109
  %113 = vset.pattern.permute.xlu0 0
  %114 = vperm.xlu0 %113, %v60
  %v115 = vpop.permute.xlu0 %114
  %118 = vset.pattern.permute.xlu0 0
  %119 = vperm.xlu0 %118, %v61
  %v120 = vpop.permute.xlu0 %119
  %123 = vset.pattern.permute.xlu0 0
  %124 = vperm.xlu0 %123, %v62
  %v125 = vpop.permute.xlu0 %124
  %128 = vset.pattern.permute.xlu0 0
  %129 = vperm.xlu0 %128, %v63
  %v130 = vpop.permute.xlu0 %129
  %133 = vset.pattern.permute.xlu0 0
  %134 = vperm.xlu0 %133, %v64
  %v135 = vpop.permute.xlu0 %134
  %138 = vset.pattern.permute.xlu0 0
  %139 = vperm.xlu0 %138, %v65
  %v140 = vpop.permute.xlu0 %139
  %143 = vset.pattern.permute.xlu0 0
  %144 = vperm.xlu0 %143, %v66
  %v145 = vpop.permute.xlu0 %144
  %v163 = vunpack.c.l.b16 %v35
  %v164 = vunpack.c.l.b16 %v36
  %v165 = vunpack.c.l.b16 %v37
  %v166 = vunpack.c.l.b16 %v38
  %v167 = vunpack.c.l.b16 %v39
  %v168 = vunpack.c.l.b16 %v40
  %v169 = vunpack.c.l.b16 %v41
  %v170 = vunpack.c.l.b16 %v42
  %v171 = vunpack.c.l.b16 %v43
  %v172 = vunpack.c.l.b16 %v44
  %v173 = vunpack.c.l.b16 %v45
  %v174 = vunpack.c.l.b16 %v46
  %v175 = vunpack.c.l.b16 %v47
  %v176 = vunpack.c.l.b16 %v48
  %v177 = vunpack.c.l.b16 %v49
  %v178 = vunpack.c.l.b16 %v50
  %v179 = vpack.c.b16 %v164, %v163
  %v180 = vpack.c.b16 %v166, %v165
  %v181 = vpack.c.b16 %v168, %v167
  %v182 = vpack.c.b16 %v170, %v169
  %v183 = vpack.c.b16 %v172, %v171
  %v184 = vpack.c.b16 %v174, %v173
  %v185 = vpack.c.b16 %v176, %v175
  %v186 = vpack.c.b16 %v178, %v177
  %v189 = vcombine.high %v33, %v33
  %v191 = vunpack.c.l.s4 1983009808
  %v192 = vunpack.c.0.s8 %v191
  %v193 = vlaneseq
  %v194 = vshrl.u32 %v193, 7
  %v195 = vsub.s32 %v192, %v194
  %v196 = vrot.slane %v33, %v195
  %v198 = vunpack.c.l.s4 1983009808
  %v199 = vunpack.c.0.s8 %v198
  %v200 = vlaneseq
  %v201 = vshrl.u32 %v200, 7
  %v202 = vsub.s32 %v199, %v201
  %v203 = vrot.slane %v189, %v202
  %v204 = vcombine.high %v196, %v196
  %v205 = vcombine.high %v203, %v203
  %v206 = vcombine.high %v34, %v34
  %v208 = vunpack.c.l.s4 1983009808
  %v209 = vunpack.c.0.s8 %v208
  %v210 = vlaneseq
  %v211 = vshrl.u32 %v210, 7
  %v212 = vsub.s32 %v209, %v211
  %v213 = vrot.slane %v34, %v212
  %v215 = vunpack.c.l.s4 1983009808
  %v216 = vunpack.c.0.s8 %v215
  %v217 = vlaneseq
  %v218 = vshrl.u32 %v217, 7
  %v219 = vsub.s32 %v216, %v218
  %v220 = vrot.slane %v206, %v219
  %v221 = vcombine.high %v213, %v213
  %v222 = vcombine.high %v220, %v220
  %vm223 = vcmask 31744
  %v225 = vsel %vm223, %v179, 0
  %v228 = vsel %vm223, %v180, 0
  %v231 = vsel %vm223, %v181, 0
  %v234 = vsel %vm223, %v182, 0
  %v237 = vsel %vm223, %v183, 0
  %v240 = vsel %vm223, %v184, 0
  %v243 = vsel %vm223, %v185, 0
  %v246 = vsel %vm223, %v186, 0
  %vm248 = vcmask 1041408
  %v250 = vsel %vm248, %v196, 0
  %v253 = vsel %vm248, %v204, 0
  %v256 = vsel %vm248, %v203, 0
  %v259 = vsel %vm248, %v205, 0
  %v262 = vsel %vm248, %v213, 0
  %v265 = vsel %vm248, %v221, 0
  %v268 = vsel %vm248, %v220, 0
  %v271 = vsel %vm248, %v222, 0
  %273 = vmatprep.subr.bf16.mxu0 %v253
  %274 = vmatpush1.bf16.msra.mxu0 %v250
  %275 = vmatprep.subr.bf16.mxu0 0
  %276 = vmatpush1.bf16.msra.mxu0 0
  %277 = vmatprep.subr.bf16.mxu0 0
  %278 = vmatpush1.bf16.msra.mxu0 0
  %279 = vmatprep.subr.bf16.mxu0 0
  %280 = vmatpush1.bf16.msra.mxu0 0
  %281 = vmatprep.subr.bf16.mxu0 0
  %282 = vmatpush1.bf16.msra.mxu0 0
  %283 = vmatprep.subr.bf16.mxu0 0
  %284 = vmatpush1.bf16.msra.mxu0 0
  %285 = vmatprep.subr.bf16.mxu0 0
  %286 = vmatpush1.bf16.msra.mxu0 0
  %287 = vmatprep.subr.bf16.mxu0 0
  %288 = vmatpush1.bf16.msra.mxu0 0
  %289 = vmatprep.subr.bf16.mxu0 0
  %290 = vmatpush1.bf16.msra.mxu0 0
  %291 = vmatprep.subr.bf16.mxu0 0
  %292 = vmatpush1.bf16.msra.mxu0 0
  %293 = vmatprep.subr.bf16.mxu0 0
  %294 = vmatpush1.bf16.msra.mxu0 0
  %295 = vmatprep.subr.bf16.mxu0 0
  %296 = vmatpush1.bf16.msra.mxu0 0
  %297 = vmatprep.subr.bf16.mxu0 0
  %298 = vmatpush1.bf16.msra.mxu0 0
  %299 = vmatprep.subr.bf16.mxu0 0
  %300 = vmatpush1.bf16.msra.mxu0 0
  %301 = vmatprep.subr.bf16.mxu0 0
  %302 = vmatpush1.bf16.msra.mxu0 0
  %303 = vmatprep.subr.bf16.mxu0 0
  %304 = vmatpush1.bf16.msra.mxu0 0
  %305 = vmatprep.mubr.bf16.mxu0 0
  %306 = vmatmul.mubr.bf16.gmra.mrb[0].mxu0 %v225
  %v307 = vpop.f32.mrb[0].mxu0
  %v308 = vadd.f32 %v70, %v307
  %v309 = vpop.f32.mrb[0].mxu0
  %v310 = vadd.f32 %v70, %v309
  %v311 = vpop.f32.mrb[0].mxu0
  %v312 = vadd.f32 %v75, %v311
  %v313 = vpop.f32.mrb[0].mxu0
  %v314 = vadd.f32 %v75, %v313
  %315 = vmatprep.mubr.bf16.mxu0 0
  %316 = vmatmul.mubr.bf16.gmra.mrb[0].mxu0 %v228
  %v317 = vpop.f32.mrb[0].mxu0
  %v318 = vadd.f32 %v80, %v317
  %v319 = vpop.f32.mrb[0].mxu0
  %v320 = vadd.f32 %v80, %v319
  %v321 = vpop.f32.mrb[0].mxu0
  %v322 = vadd.f32 %v85, %v321
  %v323 = vpop.f32.mrb[0].mxu0
  %v324 = vadd.f32 %v85, %v323
  %325 = vmatprep.mubr.bf16.mxu0 0
  %326 = vmatmul.mubr.bf16.gmra.mrb[0].mxu0 %v231
  %v327 = vpop.f32.mrb[0].mxu0
  %v328 = vadd.f32 %v90, %v327
  %v329 = vpop.f32.mrb[0].mxu0
  %v330 = vadd.f32 %v90, %v329
  %v331 = vpop.f32.mrb[0].mxu0
  %v332 = vadd.f32 %v95, %v331
  %v333 = vpop.f32.mrb[0].mxu0
  %v334 = vadd.f32 %v95, %v333
  %335 = vmatprep.mubr.bf16.mxu0 0
  %336 = vmatmul.mubr.bf16.gmra.mrb[0].mxu0 %v234
  %v337 = vpop.f32.mrb[0].mxu0
  %v338 = vadd.f32 %v100, %v337
  %v339 = vpop.f32.mrb[0].mxu0
  %v340 = vadd.f32 %v100, %v339
  %v341 = vpop.f32.mrb[0].mxu0
  %v342 = vadd.f32 %v105, %v341
  %v343 = vpop.f32.mrb[0].mxu0
  %v344 = vadd.f32 %v105, %v343
  %345 = vmatprep.mubr.bf16.mxu0 0
  %346 = vmatmul.mubr.bf16.gmra.mrb[0].mxu0 %v237
  %v347 = vpop.f32.mrb[0].mxu0
  %v348 = vadd.f32 %v110, %v347
  %v349 = vpop.f32.mrb[0].mxu0
  %v350 = vadd.f32 %v110, %v349
  %v351 = vpop.f32.mrb[0].mxu0
  %v352 = vadd.f32 %v115, %v351
  %v353 = vpop.f32.mrb[0].mxu0
  %v354 = vadd.f32 %v115, %v353
  %355 = vmatprep.mubr.bf16.mxu0 0
  %356 = vmatmul.mubr.bf16.gmra.mrb[0].mxu0 %v240
  %v357 = vpop.f32.mrb[0].mxu0
  %v358 = vadd.f32 %v120, %v357
  %v359 = vpop.f32.mrb[0].mxu0
  %v360 = vadd.f32 %v120, %v359
  %v361 = vpop.f32.mrb[0].mxu0
  %v362 = vadd.f32 %v125, %v361
  %v363 = vpop.f32.mrb[0].mxu0
  %v364 = vadd.f32 %v125, %v363
  %365 = vmatprep.mubr.bf16.mxu0 0
  %366 = vmatmul.mubr.bf16.gmra.mrb[0].mxu0 %v243
  %v367 = vpop.f32.mrb[0].mxu0
  %v368 = vadd.f32 %v130, %v367
  %v369 = vpop.f32.mrb[0].mxu0
  %v370 = vadd.f32 %v130, %v369
  %v371 = vpop.f32.mrb[0].mxu0
  %v372 = vadd.f32 %v135, %v371
  %v373 = vpop.f32.mrb[0].mxu0
  %v374 = vadd.f32 %v135, %v373
  %375 = vmatprep.mubr.bf16.mxu0 0
  %376 = vmatmul.mubr.bf16.gmra.mrb[0].mxu0 %v246
  %v377 = vpop.f32.mrb[0].mxu0
  %v378 = vadd.f32 %v140, %v377
  %v379 = vpop.f32.mrb[0].mxu0
  %v380 = vadd.f32 %v140, %v379
  %v381 = vpop.f32.mrb[0].mxu0
  %v382 = vadd.f32 %v145, %v381
  %v383 = vpop.f32.mrb[0].mxu0
  %v384 = vadd.f32 %v145, %v383
  %385 = vdwg.mxu0
  %386 = vmatprep.subr.bf16.mxu0 %v259
  %387 = vmatpush1.bf16.msra.mxu0 %v256
  %388 = vmatprep.subr.bf16.mxu0 0
  %389 = vmatpush1.bf16.msra.mxu0 0
  %390 = vmatprep.subr.bf16.mxu0 0
  %391 = vmatpush1.bf16.msra.mxu0 0
  %392 = vmatprep.subr.bf16.mxu0 0
  %393 = vmatpush1.bf16.msra.mxu0 0
  %394 = vmatprep.subr.bf16.mxu0 0
  %395 = vmatpush1.bf16.msra.mxu0 0
  %396 = vmatprep.subr.bf16.mxu0 0
  %397 = vmatpush1.bf16.msra.mxu0 0
  %398 = vmatprep.subr.bf16.mxu0 0
  %399 = vmatpush1.bf16.msra.mxu0 0
  %400 = vmatprep.subr.bf16.mxu0 0
  %401 = vmatpush1.bf16.msra.mxu0 0
  %402 = vmatprep.subr.bf16.mxu0 0
  %403 = vmatpush1.bf16.msra.mxu0 0
  %404 = vmatprep.subr.bf16.mxu0 0
  %405 = vmatpush1.bf16.msra.mxu0 0
  %406 = vmatprep.subr.bf16.mxu0 0
  %407 = vmatpush1.bf16.msra.mxu0 0
  %408 = vmatprep.subr.bf16.mxu0 0
  %409 = vmatpush1.bf16.msra.mxu0 0
  %410 = vmatprep.subr.bf16.mxu0 0
  %411 = vmatpush1.bf16.msra.mxu0 0
  %412 = vmatprep.subr.bf16.mxu0 0
  %413 = vmatpush1.bf16.msra.mxu0 0
  %414 = vmatprep.subr.bf16.mxu0 0
  %415 = vmatpush1.bf16.msra.mxu0 0
  %416 = vmatprep.subr.bf16.mxu0 0
  %417 = vmatpush1.bf16.msra.mxu0 0
  %418 = vmatprep.mubr.bf16.mxu0 0
  %419 = vmatmul.mubr.bf16.gmra.mrb[0].mxu0 %v225
  %v420 = vpop.f32.mrb[0].mxu0
  %v421 = vadd.f32 %v70, %v420
  %v422 = vpop.f32.mrb[0].mxu0
  %v423 = vadd.f32 %v70, %v422
  %v424 = vpop.f32.mrb[0].mxu0
  %v425 = vadd.f32 %v75, %v424
  %v426 = vpop.f32.mrb[0].mxu0
  %v427 = vadd.f32 %v75, %v426
  %428 = vmatprep.mubr.bf16.mxu0 0
  %429 = vmatmul.mubr.bf16.gmra.mrb[0].mxu0 %v228
  %v430 = vpop.f32.mrb[0].mxu0
  %v431 = vadd.f32 %v80, %v430
  %v432 = vpop.f32.mrb[0].mxu0
  %v433 = vadd.f32 %v80, %v432
  %v434 = vpop.f32.mrb[0].mxu0
  %v435 = vadd.f32 %v85, %v434
  %v436 = vpop.f32.mrb[0].mxu0
  %v437 = vadd.f32 %v85, %v436
  %438 = vmatprep.mubr.bf16.mxu0 0
  %439 = vmatmul.mubr.bf16.gmra.mrb[0].mxu0 %v231
  %v440 = vpop.f32.mrb[0].mxu0
  %v441 = vadd.f32 %v90, %v440
  %v442 = vpop.f32.mrb[0].mxu0
  %v443 = vadd.f32 %v90, %v442
  %v444 = vpop.f32.mrb[0].mxu0
  %v445 = vadd.f32 %v95, %v444
  %v446 = vpop.f32.mrb[0].mxu0
  %v447 = vadd.f32 %v95, %v446
  %448 = vmatprep.mubr.bf16.mxu0 0
  %449 = vmatmul.mubr.bf16.gmra.mrb[0].mxu0 %v234
  %v450 = vpop.f32.mrb[0].mxu0
  %v451 = vadd.f32 %v100, %v450
  %v452 = vpop.f32.mrb[0].mxu0
  %v453 = vadd.f32 %v100, %v452
  %v454 = vpop.f32.mrb[0].mxu0
  %v455 = vadd.f32 %v105, %v454
  %v456 = vpop.f32.mrb[0].mxu0
  %v457 = vadd.f32 %v105, %v456
  %458 = vmatprep.mubr.bf16.mxu0 0
  %459 = vmatmul.mubr.bf16.gmra.mrb[0].mxu0 %v237
  %v460 = vpop.f32.mrb[0].mxu0
  %v461 = vadd.f32 %v110, %v460
  %v462 = vpop.f32.mrb[0].mxu0
  %v463 = vadd.f32 %v110, %v462
  %v464 = vpop.f32.mrb[0].mxu0
  %v465 = vadd.f32 %v115, %v464
  %v466 = vpop.f32.mrb[0].mxu0
  %v467 = vadd.f32 %v115, %v466
  %468 = vmatprep.mubr.bf16.mxu0 0
  %469 = vmatmul.mubr.bf16.gmra.mrb[0].mxu0 %v240
  %v470 = vpop.f32.mrb[0].mxu0
  %v471 = vadd.f32 %v120, %v470
  %v472 = vpop.f32.mrb[0].mxu0
  %v473 = vadd.f32 %v120, %v472
  %v474 = vpop.f32.mrb[0].mxu0
  %v475 = vadd.f32 %v125, %v474
  %v476 = vpop.f32.mrb[0].mxu0
  %v477 = vadd.f32 %v125, %v476
  %478 = vmatprep.mubr.bf16.mxu0 0
  %479 = vmatmul.mubr.bf16.gmra.mrb[0].mxu0 %v243
  %v480 = vpop.f32.mrb[0].mxu0
  %v481 = vadd.f32 %v130, %v480
  %v482 = vpop.f32.mrb[0].mxu0
  %v483 = vadd.f32 %v130, %v482
  %v484 = vpop.f32.mrb[0].mxu0
  %v485 = vadd.f32 %v135, %v484
  %v486 = vpop.f32.mrb[0].mxu0
  %v487 = vadd.f32 %v135, %v486
  %488 = vmatprep.mubr.bf16.mxu0 0
  %489 = vmatmul.mubr.bf16.gmra.mrb[0].mxu0 %v246
  %v490 = vpop.f32.mrb[0].mxu0
  %v491 = vadd.f32 %v140, %v490
  %v492 = vpop.f32.mrb[0].mxu0
  %v493 = vadd.f32 %v140, %v492
  %v494 = vpop.f32.mrb[0].mxu0
  %v495 = vadd.f32 %v145, %v494
  %v496 = vpop.f32.mrb[0].mxu0
  %v497 = vadd.f32 %v145, %v496
  %498 = vdwg.mxu0
  %499 = vmatprep.subr.bf16.mxu0 %v265
  %500 = vmatpush1.bf16.msra.mxu0 %v262
  %501 = vmatprep.subr.bf16.mxu0 0
  %502 = vmatpush1.bf16.msra.mxu0 0
  %503 = vmatprep.subr.bf16.mxu0 0
  %504 = vmatpush1.bf16.msra.mxu0 0
  %505 = vmatprep.subr.bf16.mxu0 0
  %506 = vmatpush1.bf16.msra.mxu0 0
  %507 = vmatprep.subr.bf16.mxu0 0
  %508 = vmatpush1.bf16.msra.mxu0 0
  %509 = vmatprep.subr.bf16.mxu0 0
  %510 = vmatpush1.bf16.msra.mxu0 0
  %511 = vmatprep.subr.bf16.mxu0 0
  %512 = vmatpush1.bf16.msra.mxu0 0
  %513 = vmatprep.subr.bf16.mxu0 0
  %514 = vmatpush1.bf16.msra.mxu0 0
  %515 = vmatprep.subr.bf16.mxu0 0
  %516 = vmatpush1.bf16.msra.mxu0 0
  %517 = vmatprep.subr.bf16.mxu0 0
  %518 = vmatpush1.bf16.msra.mxu0 0
  %519 = vmatprep.subr.bf16.mxu0 0
  %520 = vmatpush1.bf16.msra.mxu0 0
  %521 = vmatprep.subr.bf16.mxu0 0
  %522 = vmatpush1.bf16.msra.mxu0 0
  %523 = vmatprep.subr.bf16.mxu0 0
  %524 = vmatpush1.bf16.msra.mxu0 0
  %525 = vmatprep.subr.bf16.mxu0 0
  %526 = vmatpush1.bf16.msra.mxu0 0
  %527 = vmatprep.subr.bf16.mxu0 0
  %528 = vmatpush1.bf16.msra.mxu0 0
  %529 = vmatprep.subr.bf16.mxu0 0
  %530 = vmatpush1.bf16.msra.mxu0 0
  %531 = vmatprep.mubr.bf16.mxu0 0
  %532 = vmatmul.mubr.bf16.gmra.mrb[0].mxu0 %v225
  %v533 = vpop.f32.mrb[0].mxu0
  %v534 = vadd.f32 %v70, %v533
  %v535 = vpop.f32.mrb[0].mxu0
  %v536 = vadd.f32 %v70, %v535
  %v537 = vpop.f32.mrb[0].mxu0
  %v538 = vadd.f32 %v75, %v537
  %v539 = vpop.f32.mrb[0].mxu0
  %v540 = vadd.f32 %v75, %v539
  %541 = vmatprep.mubr.bf16.mxu0 0
  %542 = vmatmul.mubr.bf16.gmra.mrb[0].mxu0 %v228
  %v543 = vpop.f32.mrb[0].mxu0
  %v544 = vadd.f32 %v80, %v543
  %v545 = vpop.f32.mrb[0].mxu0
  %v546 = vadd.f32 %v80, %v545
  %v547 = vpop.f32.mrb[0].mxu0
  %v548 = vadd.f32 %v85, %v547
  %v549 = vpop.f32.mrb[0].mxu0
  %v550 = vadd.f32 %v85, %v549
  %551 = vmatprep.mubr.bf16.mxu0 0
  %552 = vmatmul.mubr.bf16.gmra.mrb[0].mxu0 %v231
  %v553 = vpop.f32.mrb[0].mxu0
  %v554 = vadd.f32 %v90, %v553
  %v555 = vpop.f32.mrb[0].mxu0
  %v556 = vadd.f32 %v90, %v555
  %v557 = vpop.f32.mrb[0].mxu0
  %v558 = vadd.f32 %v95, %v557
  %v559 = vpop.f32.mrb[0].mxu0
  %v560 = vadd.f32 %v95, %v559
  %561 = vmatprep.mubr.bf16.mxu0 0
  %562 = vmatmul.mubr.bf16.gmra.mrb[0].mxu0 %v234
  %v563 = vpop.f32.mrb[0].mxu0
  %v564 = vadd.f32 %v100, %v563
  %v565 = vpop.f32.mrb[0].mxu0
  %v566 = vadd.f32 %v100, %v565
  %v567 = vpop.f32.mrb[0].mxu0
  %v568 = vadd.f32 %v105, %v567
  %v569 = vpop.f32.mrb[0].mxu0
  %v570 = vadd.f32 %v105, %v569
  %571 = vmatprep.mubr.bf16.mxu0 0
  %572 = vmatmul.mubr.bf16.gmra.mrb[0].mxu0 %v237
  %v573 = vpop.f32.mrb[0].mxu0
  %v574 = vadd.f32 %v110, %v573
  %v575 = vpop.f32.mrb[0].mxu0
  %v576 = vadd.f32 %v110, %v575
  %v577 = vpop.f32.mrb[0].mxu0
  %v578 = vadd.f32 %v115, %v577
  %v579 = vpop.f32.mrb[0].mxu0
  %v580 = vadd.f32 %v115, %v579
  %581 = vmatprep.mubr.bf16.mxu0 0
  %582 = vmatmul.mubr.bf16.gmra.mrb[0].mxu0 %v240
  %v583 = vpop.f32.mrb[0].mxu0
  %v584 = vadd.f32 %v120, %v583
  %v585 = vpop.f32.mrb[0].mxu0
  %v586 = vadd.f32 %v120, %v585
  %v587 = vpop.f32.mrb[0].mxu0
  %v588 = vadd.f32 %v125, %v587
  %v589 = vpop.f32.mrb[0].mxu0
  %v590 = vadd.f32 %v125, %v589
  %591 = vmatprep.mubr.bf16.mxu0 0
  %592 = vmatmul.mubr.bf16.gmra.mrb[0].mxu0 %v243
  %v593 = vpop.f32.mrb[0].mxu0
  %v594 = vadd.f32 %v130, %v593
  %v595 = vpop.f32.mrb[0].mxu0
  %v596 = vadd.f32 %v130, %v595
  %v597 = vpop.f32.mrb[0].mxu0
  %v598 = vadd.f32 %v135, %v597
  %v599 = vpop.f32.mrb[0].mxu0
  %v600 = vadd.f32 %v135, %v599
  %601 = vmatprep.mubr.bf16.mxu0 0
  %602 = vmatmul.mubr.bf16.gmra.mrb[0].mxu0 %v246
  %v603 = vpop.f32.mrb[0].mxu0
  %v604 = vadd.f32 %v140, %v603
  %v605 = vpop.f32.mrb[0].mxu0
  %v606 = vadd.f32 %v140, %v605
  %v607 = vpop.f32.mrb[0].mxu0
  %v608 = vadd.f32 %v145, %v607
  %v609 = vpop.f32.mrb[0].mxu0
  %v610 = vadd.f32 %v145, %v609
  %611 = vdwg.mxu0
  %612 = vmatprep.subr.bf16.mxu0 %v271
  %613 = vmatpush1.bf16.msra.mxu0 %v268
  %614 = vmatprep.subr.bf16.mxu0 0
  %615 = vmatpush1.bf16.msra.mxu0 0
  %616 = vmatprep.subr.bf16.mxu0 0
  %617 = vmatpush1.bf16.msra.mxu0 0
  %618 = vmatprep.subr.bf16.mxu0 0
  %619 = vmatpush1.bf16.msra.mxu0 0
  %620 = vmatprep.subr.bf16.mxu0 0
  %621 = vmatpush1.bf16.msra.mxu0 0
  %622 = vmatprep.subr.bf16.mxu0 0
  %623 = vmatpush1.bf16.msra.mxu0 0
  %624 = vmatprep.subr.bf16.mxu0 0
  %625 = vmatpush1.bf16.msra.mxu0 0
  %626 = vmatprep.subr.bf16.mxu0 0
  %627 = vmatpush1.bf16.msra.mxu0 0
  %628 = vmatprep.subr.bf16.mxu0 0
  %629 = vmatpush1.bf16.msra.mxu0 0
  %630 = vmatprep.subr.bf16.mxu0 0
  %631 = vmatpush1.bf16.msra.mxu0 0
  %632 = vmatprep.subr.bf16.mxu0 0
  %633 = vmatpush1.bf16.msra.mxu0 0
  %634 = vmatprep.subr.bf16.mxu0 0
  %635 = vmatpush1.bf16.msra.mxu0 0
  %636 = vmatprep.subr.bf16.mxu0 0
  %637 = vmatpush1.bf16.msra.mxu0 0
  %638 = vmatprep.subr.bf16.mxu0 0
  %639 = vmatpush1.bf16.msra.mxu0 0
  %640 = vmatprep.subr.bf16.mxu0 0
  %641 = vmatpush1.bf16.msra.mxu0 0
  %642 = vmatprep.subr.bf16.mxu0 0
  %643 = vmatpush1.bf16.msra.mxu0 0
  %644 = vmatprep.mubr.bf16.mxu0 0
  %645 = vmatmul.mubr.bf16.gmra.mrb[0].mxu0 %v225
  %v646 = vpop.f32.mrb[0].mxu0
  %v647 = vadd.f32 %v70, %v646
  %v648 = vpop.f32.mrb[0].mxu0
  %v649 = vadd.f32 %v70, %v648
  %v650 = vpop.f32.mrb[0].mxu0
  %v651 = vadd.f32 %v75, %v650
  %v652 = vpop.f32.mrb[0].mxu0
  %v653 = vadd.f32 %v75, %v652
  %654 = vmatprep.mubr.bf16.mxu0 0
  %655 = vmatmul.mubr.bf16.gmra.mrb[0].mxu0 %v228
  %v656 = vpop.f32.mrb[0].mxu0
  %v657 = vadd.f32 %v80, %v656
  %v658 = vpop.f32.mrb[0].mxu0
  %v659 = vadd.f32 %v80, %v658
  %v660 = vpop.f32.mrb[0].mxu0
  %v661 = vadd.f32 %v85, %v660
  %v662 = vpop.f32.mrb[0].mxu0
  %v663 = vadd.f32 %v85, %v662
  %664 = vmatprep.mubr.bf16.mxu0 0
  %665 = vmatmul.mubr.bf16.gmra.mrb[0].mxu0 %v231
  %v666 = vpop.f32.mrb[0].mxu0
  %v667 = vadd.f32 %v90, %v666
  %v668 = vpop.f32.mrb[0].mxu0
  %v669 = vadd.f32 %v90, %v668
  %v670 = vpop.f32.mrb[0].mxu0
  %v671 = vadd.f32 %v95, %v670
  %v672 = vpop.f32.mrb[0].mxu0
  %v673 = vadd.f32 %v95, %v672
  %674 = vmatprep.mubr.bf16.mxu0 0
  %675 = vmatmul.mubr.bf16.gmra.mrb[0].mxu0 %v234
  %v676 = vpop.f32.mrb[0].mxu0
  %v677 = vadd.f32 %v100, %v676
  %v678 = vpop.f32.mrb[0].mxu0
  %v679 = vadd.f32 %v100, %v678
  %v680 = vpop.f32.mrb[0].mxu0
  %v681 = vadd.f32 %v105, %v680
  %v682 = vpop.f32.mrb[0].mxu0
  %v683 = vadd.f32 %v105, %v682
  %684 = vmatprep.mubr.bf16.mxu0 0
  %685 = vmatmul.mubr.bf16.gmra.mrb[0].mxu0 %v237
  %v686 = vpop.f32.mrb[0].mxu0
  %v687 = vadd.f32 %v110, %v686
  %v688 = vpop.f32.mrb[0].mxu0
  %v689 = vadd.f32 %v110, %v688
  %v690 = vpop.f32.mrb[0].mxu0
  %v691 = vadd.f32 %v115, %v690
  %v692 = vpop.f32.mrb[0].mxu0
  %v693 = vadd.f32 %v115, %v692
  %694 = vmatprep.mubr.bf16.mxu0 0
  %695 = vmatmul.mubr.bf16.gmra.mrb[0].mxu0 %v240
  %v696 = vpop.f32.mrb[0].mxu0
  %v697 = vadd.f32 %v120, %v696
  %v698 = vpop.f32.mrb[0].mxu0
  %v699 = vadd.f32 %v120, %v698
  %v700 = vpop.f32.mrb[0].mxu0
  %v701 = vadd.f32 %v125, %v700
  %v702 = vpop.f32.mrb[0].mxu0
  %v703 = vadd.f32 %v125, %v702
  %704 = vmatprep.mubr.bf16.mxu0 0
  %705 = vmatmul.mubr.bf16.gmra.mrb[0].mxu0 %v243
  %v706 = vpop.f32.mrb[0].mxu0
  %v707 = vadd.f32 %v130, %v706
  %v708 = vpop.f32.mrb[0].mxu0
  %v709 = vadd.f32 %v130, %v708
  %v710 = vpop.f32.mrb[0].mxu0
  %v711 = vadd.f32 %v135, %v710
  %v712 = vpop.f32.mrb[0].mxu0
  %v713 = vadd.f32 %v135, %v712
  %714 = vmatprep.mubr.bf16.mxu0 0
  %715 = vmatmul.mubr.bf16.gmra.mrb[0].mxu0 %v246
  %v716 = vpop.f32.mrb[0].mxu0
  %v717 = vadd.f32 %v140, %v716
  %v718 = vpop.f32.mrb[0].mxu0
  %v719 = vadd.f32 %v140, %v718
  %v720 = vpop.f32.mrb[0].mxu0
  %v721 = vadd.f32 %v145, %v720
  %v722 = vpop.f32.mrb[0].mxu0
  %v723 = vadd.f32 %v145, %v722
  %724 = vdwg.mxu0
  %v725 = vmax.f32 %v308, 0.0
  %v726 = vmax.f32 %v310, 0.0
  %v727 = vmax.f32 %v421, 0.0
  %v728 = vmax.f32 %v423, 0.0
  %v729 = vmax.f32 %v534, 0.0
  %v730 = vmax.f32 %v536, 0.0
  %v731 = vmax.f32 %v647, 0.0
  %v732 = vmax.f32 %v649, 0.0
  %v733 = vmax.f32 %v312, 0.0
  %v734 = vmax.f32 %v314, 0.0
  %v735 = vmax.f32 %v425, 0.0
  %v736 = vmax.f32 %v427, 0.0
  %v737 = vmax.f32 %v538, 0.0
  %v738 = vmax.f32 %v540, 0.0
  %v739 = vmax.f32 %v651, 0.0
  %v740 = vmax.f32 %v653, 0.0
  %v741 = vmax.f32 %v318, 0.0
  %v742 = vmax.f32 %v320, 0.0
  %v743 = vmax.f32 %v431, 0.0
  %v744 = vmax.f32 %v433, 0.0
  %v745 = vmax.f32 %v544, 0.0
  %v746 = vmax.f32 %v546, 0.0
  %v747 = vmax.f32 %v657, 0.0
  %v748 = vmax.f32 %v659, 0.0
  %v749 = vmax.f32 %v322, 0.0
  %v750 = vmax.f32 %v324, 0.0
  %v751 = vmax.f32 %v435, 0.0
  %v752 = vmax.f32 %v437, 0.0
  %v753 = vmax.f32 %v548, 0.0
  %v754 = vmax.f32 %v550, 0.0
  %v755 = vmax.f32 %v661, 0.0
  %v756 = vmax.f32 %v663, 0.0
  %v757 = vmax.f32 %v328, 0.0
  %v758 = vmax.f32 %v330, 0.0
  %v759 = vmax.f32 %v441, 0.0
  %v760 = vmax.f32 %v443, 0.0
  %v761 = vmax.f32 %v554, 0.0
  %v762 = vmax.f32 %v556, 0.0
  %v763 = vmax.f32 %v667, 0.0
  %v764 = vmax.f32 %v669, 0.0
  %v765 = vmax.f32 %v332, 0.0
  %v766 = vmax.f32 %v334, 0.0
  %v767 = vmax.f32 %v445, 0.0
  %v768 = vmax.f32 %v447, 0.0
  %v769 = vmax.f32 %v558, 0.0
  %v770 = vmax.f32 %v560, 0.0
  %v771 = vmax.f32 %v671, 0.0
  %v772 = vmax.f32 %v673, 0.0
  %v773 = vmax.f32 %v338, 0.0
  %v774 = vmax.f32 %v340, 0.0
  %v775 = vmax.f32 %v451, 0.0
  %v776 = vmax.f32 %v453, 0.0
  %v777 = vmax.f32 %v564, 0.0
  %v778 = vmax.f32 %v566, 0.0
  %v779 = vmax.f32 %v677, 0.0
  %v780 = vmax.f32 %v679, 0.0
  %v781 = vmax.f32 %v342, 0.0
  %v782 = vmax.f32 %v344, 0.0
  %v783 = vmax.f32 %v455, 0.0
  %v784 = vmax.f32 %v457, 0.0
  %v785 = vmax.f32 %v568, 0.0
  %v786 = vmax.f32 %v570, 0.0
  %v787 = vmax.f32 %v681, 0.0
  %v788 = vmax.f32 %v683, 0.0
  %v789 = vmax.f32 %v348, 0.0
  %v790 = vmax.f32 %v350, 0.0
  %v791 = vmax.f32 %v461, 0.0
  %v792 = vmax.f32 %v463, 0.0
  %v793 = vmax.f32 %v574, 0.0
  %v794 = vmax.f32 %v576, 0.0
  %v795 = vmax.f32 %v687, 0.0
  %v796 = vmax.f32 %v689, 0.0
  %v797 = vmax.f32 %v352, 0.0
  %v798 = vmax.f32 %v354, 0.0
  %v799 = vmax.f32 %v465, 0.0
  %v800 = vmax.f32 %v467, 0.0
  %v801 = vmax.f32 %v578, 0.0
  %v802 = vmax.f32 %v580, 0.0
  %v803 = vmax.f32 %v691, 0.0
  %v804 = vmax.f32 %v693, 0.0
  %v805 = vmax.f32 %v358, 0.0
  %v806 = vmax.f32 %v360, 0.0
  %v807 = vmax.f32 %v471, 0.0
  %v808 = vmax.f32 %v473, 0.0
  %v809 = vmax.f32 %v584, 0.0
  %v810 = vmax.f32 %v586, 0.0
  %v811 = vmax.f32 %v697, 0.0
  %v812 = vmax.f32 %v699, 0.0
  %v813 = vmax.f32 %v362, 0.0
  %v814 = vmax.f32 %v364, 0.0
  %v815 = vmax.f32 %v475, 0.0
  %v816 = vmax.f32 %v477, 0.0
  %v817 = vmax.f32 %v588, 0.0
  %v818 = vmax.f32 %v590, 0.0
  %v819 = vmax.f32 %v701, 0.0
  %v820 = vmax.f32 %v703, 0.0
  %v821 = vmax.f32 %v368, 0.0
  %v822 = vmax.f32 %v370, 0.0
  %v823 = vmax.f32 %v481, 0.0
  %v824 = vmax.f32 %v483, 0.0
  %v825 = vmax.f32 %v594, 0.0
  %v826 = vmax.f32 %v596, 0.0
  %v827 = vmax.f32 %v707, 0.0
  %v828 = vmax.f32 %v709, 0.0
  %v829 = vmax.f32 %v372, 0.0
  %v830 = vmax.f32 %v374, 0.0
  %v831 = vmax.f32 %v485, 0.0
  %v832 = vmax.f32 %v487, 0.0
  %v833 = vmax.f32 %v598, 0.0
  %v834 = vmax.f32 %v600, 0.0
  %v835 = vmax.f32 %v711, 0.0
  %v836 = vmax.f32 %v713, 0.0
  %v837 = vmax.f32 %v378, 0.0
  %v838 = vmax.f32 %v380, 0.0
  %v839 = vmax.f32 %v491, 0.0
  %v840 = vmax.f32 %v493, 0.0
  %v841 = vmax.f32 %v604, 0.0
  %v842 = vmax.f32 %v606, 0.0
  %v843 = vmax.f32 %v717, 0.0
  %v844 = vmax.f32 %v719, 0.0
  %v845 = vmax.f32 %v382, 0.0
  %v846 = vmax.f32 %v384, 0.0
  %v847 = vmax.f32 %v495, 0.0
  %v848 = vmax.f32 %v497, 0.0
  %v849 = vmax.f32 %v608, 0.0
  %v850 = vmax.f32 %v610, 0.0
  %v851 = vmax.f32 %v721, 0.0
  %v852 = vmax.f32 %v723, 0.0
  %v853 = vpack.c.bf16 %v733, %v725
  %v854 = vpack.c.bf16 %v734, %v726
  %v855 = vpack.c.bf16 %v735, %v727
  %v856 = vpack.c.bf16 %v736, %v728
  %v857 = vpack.c.bf16 %v737, %v729
  %v858 = vpack.c.bf16 %v738, %v730
  %v859 = vpack.c.bf16 %v739, %v731
  %v860 = vpack.c.bf16 %v740, %v732
  %v861 = vpack.c.bf16 %v749, %v741
  %v862 = vpack.c.bf16 %v750, %v742
  %v863 = vpack.c.bf16 %v751, %v743
  %v864 = vpack.c.bf16 %v752, %v744
  %v865 = vpack.c.bf16 %v753, %v745
  %v866 = vpack.c.bf16 %v754, %v746
  %v867 = vpack.c.bf16 %v755, %v747
  %v868 = vpack.c.bf16 %v756, %v748
  %v869 = vpack.c.bf16 %v765, %v757
  %v870 = vpack.c.bf16 %v766, %v758
  %v871 = vpack.c.bf16 %v767, %v759
  %v872 = vpack.c.bf16 %v768, %v760
  %v873 = vpack.c.bf16 %v769, %v761
  %v874 = vpack.c.bf16 %v770, %v762
  %v875 = vpack.c.bf16 %v771, %v763
  %v876 = vpack.c.bf16 %v772, %v764
  %v877 = vpack.c.bf16 %v781, %v773
  %v878 = vpack.c.bf16 %v782, %v774
  %v879 = vpack.c.bf16 %v783, %v775
  %v880 = vpack.c.bf16 %v784, %v776
  %v881 = vpack.c.bf16 %v785, %v777
  %v882 = vpack.c.bf16 %v786, %v778
  %v883 = vpack.c.bf16 %v787, %v779
  %v884 = vpack.c.bf16 %v788, %v780
  %v885 = vpack.c.bf16 %v797, %v789
  %v886 = vpack.c.bf16 %v798, %v790
  %v887 = vpack.c.bf16 %v799, %v791
  %v888 = vpack.c.bf16 %v800, %v792
  %v889 = vpack.c.bf16 %v801, %v793
  %v890 = vpack.c.bf16 %v802, %v794
  %v891 = vpack.c.bf16 %v803, %v795
  %v892 = vpack.c.bf16 %v804, %v796
  %v893 = vpack.c.bf16 %v813, %v805
  %v894 = vpack.c.bf16 %v814, %v806
  %v895 = vpack.c.bf16 %v815, %v807
  %v896 = vpack.c.bf16 %v816, %v808
  %v897 = vpack.c.bf16 %v817, %v809
  %v898 = vpack.c.bf16 %v818, %v810
  %v899 = vpack.c.bf16 %v819, %v811
  %v900 = vpack.c.bf16 %v820, %v812
  %v901 = vpack.c.bf16 %v829, %v821
  %v902 = vpack.c.bf16 %v830, %v822
  %v903 = vpack.c.bf16 %v831, %v823
  %v904 = vpack.c.bf16 %v832, %v824
  %v905 = vpack.c.bf16 %v833, %v825
  %v906 = vpack.c.bf16 %v834, %v826
  %v907 = vpack.c.bf16 %v835, %v827
  %v908 = vpack.c.bf16 %v836, %v828
  %v909 = vpack.c.bf16 %v845, %v837
  %v910 = vpack.c.bf16 %v846, %v838
  %v911 = vpack.c.bf16 %v847, %v839
  %v912 = vpack.c.bf16 %v848, %v840
  %v913 = vpack.c.bf16 %v849, %v841
  %v914 = vpack.c.bf16 %v850, %v842
  %v915 = vpack.c.bf16 %v851, %v843
  %v916 = vpack.c.bf16 %v852, %v844
  %v917 = vld [vmem:[%s3] sm:$0xf]
  %v918 = vld [vmem:[%s3 + $0x4] sm:$0xf]
  %v919 = vld [vmem:[%s3 + $0x8] sm:$0xf]
  %v920 = vld [vmem:[%s3 + $0xc] sm:$0xf]
  %v921 = vld [vmem:[%s3 + $0x10] sm:$0xf]
  %v922 = vld [vmem:[%s3 + $0x14] sm:$0xf]
  %v923 = vld [vmem:[%s3 + $0x18] sm:$0xf]
  %v924 = vld [vmem:[%s3 + $0x1c] sm:$0xf]
  %v925 = vld [vmem:[%s4] sm:$0xff]
  %v926 = vld [vmem:[%s4 + $0x8] sm:$0xff]
  %v927 = vld [vmem:[%s4 + $0x10] sm:$0xff]
  %v928 = vld [vmem:[%s4 + $0x18] sm:$0xff]
  %v929 = vld [vmem:[%s4 + $0x20] sm:$0xff]
  %v930 = vld [vmem:[%s4 + $0x28] sm:$0xff]
  %v931 = vld [vmem:[%s4 + $0x30] sm:$0xff]
  %v932 = vld [vmem:[%s4 + $0x38] sm:$0xff]
  %934 = vset.pattern.permute.xlu0 0
  %935 = vperm.xlu0 %934, %v925
  %v936 = vpop.permute.xlu0 %935
  %939 = vset.pattern.permute.xlu0 0
  %940 = vperm.xlu0 %939, %v926
  %v941 = vpop.permute.xlu0 %940
  %944 = vset.pattern.permute.xlu0 0
  %945 = vperm.xlu0 %944, %v927
  %v946 = vpop.permute.xlu0 %945
  %949 = vset.pattern.permute.xlu0 0
  %950 = vperm.xlu0 %949, %v928
  %v951 = vpop.permute.xlu0 %950
  %954 = vset.pattern.permute.xlu0 0
  %955 = vperm.xlu0 %954, %v929
  %v956 = vpop.permute.xlu0 %955
  %959 = vset.pattern.permute.xlu0 0
  %960 = vperm.xlu0 %959, %v930
  %v961 = vpop.permute.xlu0 %960
  %964 = vset.pattern.permute.xlu0 0
  %965 = vperm.xlu0 %964, %v931
  %v966 = vpop.permute.xlu0 %965
  %969 = vset.pattern.permute.xlu0 0
  %970 = vperm.xlu0 %969, %v932
  %v971 = vpop.permute.xlu0 %970
  %v981 = vunpack.c.l.b16 %v917
  %v982 = vunpack.c.l.b16 %v918
  %v983 = vunpack.c.l.b16 %v919
  %v984 = vunpack.c.l.b16 %v920
  %v985 = vunpack.c.l.b16 %v921
  %v986 = vunpack.c.l.b16 %v922
  %v987 = vunpack.c.l.b16 %v923
  %v988 = vunpack.c.l.b16 %v924
  %v989 = vpack.c.b16 %v982, %v981
  %v990 = vpack.c.b16 %v984, %v983
  %v991 = vpack.c.b16 %v986, %v985
  %v992 = vpack.c.b16 %v988, %v987
  %997 = vmatprep.subr.bf16.mxu0 %v854
  %998 = vmatpush1.bf16.msra.mxu0 %v853
  %999 = vmatprep.subr.bf16.mxu0 %v862
  %1000 = vmatpush1.bf16.msra.mxu0 %v861
  %1001 = vmatprep.subr.bf16.mxu0 %v870
  %1002 = vmatpush1.bf16.msra.mxu0 %v869
  %1003 = vmatprep.subr.bf16.mxu0 %v878
  %1004 = vmatpush1.bf16.msra.mxu0 %v877
  %1005 = vmatprep.subr.bf16.mxu0 %v886
  %1006 = vmatpush1.bf16.msra.mxu0 %v885
  %1007 = vmatprep.subr.bf16.mxu0 %v894
  %1008 = vmatpush1.bf16.msra.mxu0 %v893
  %1009 = vmatprep.subr.bf16.mxu0 %v902
  %1010 = vmatpush1.bf16.msra.mxu0 %v901
  %1011 = vmatprep.subr.bf16.mxu0 %v910
  %1012 = vmatpush1.bf16.msra.mxu0 %v909
  %1013 = vmatprep.subr.bf16.mxu0 0
  %1014 = vmatpush1.bf16.msra.mxu0 0
  %1015 = vmatprep.subr.bf16.mxu0 0
  %1016 = vmatpush1.bf16.msra.mxu0 0
  %1017 = vmatprep.subr.bf16.mxu0 0
  %1018 = vmatpush1.bf16.msra.mxu0 0
  %1019 = vmatprep.subr.bf16.mxu0 0
  %1020 = vmatpush1.bf16.msra.mxu0 0
  %1021 = vmatprep.subr.bf16.mxu0 0
  %1022 = vmatpush1.bf16.msra.mxu0 0
  %1023 = vmatprep.subr.bf16.mxu0 0
  %1024 = vmatpush1.bf16.msra.mxu0 0
  %1025 = vmatprep.subr.bf16.mxu0 0
  %1026 = vmatpush1.bf16.msra.mxu0 0
  %1027 = vmatprep.subr.bf16.mxu0 0
  %1028 = vmatpush1.bf16.msra.mxu0 0
  %1029 = vmatprep.mubr.bf16.mxu0 0
  %1030 = vmatmul.mubr.bf16.gmra.mrb[0].mxu0 %v989
  %v1031 = vpop.f32.mrb[0].mxu0
  %v1032 = vadd.f32 %v936, %v1031
  %v1033 = vpop.f32.mrb[0].mxu0
  %v1034 = vadd.f32 %v936, %v1033
  %v1035 = vpop.f32.mrb[0].mxu0
  %v1036 = vadd.f32 %v941, %v1035
  %v1037 = vpop.f32.mrb[0].mxu0
  %v1038 = vadd.f32 %v941, %v1037
  %1039 = vmatprep.mubr.bf16.mxu0 0
  %1040 = vmatmul.mubr.bf16.gmra.mrb[0].mxu0 %v990
  %v1041 = vpop.f32.mrb[0].mxu0
  %v1042 = vadd.f32 %v946, %v1041
  %v1043 = vpop.f32.mrb[0].mxu0
  %v1044 = vadd.f32 %v946, %v1043
  %v1045 = vpop.f32.mrb[0].mxu0
  %v1046 = vadd.f32 %v951, %v1045
  %v1047 = vpop.f32.mrb[0].mxu0
  %v1048 = vadd.f32 %v951, %v1047
  %1049 = vmatprep.mubr.bf16.mxu0 0
  %1050 = vmatmul.mubr.bf16.gmra.mrb[0].mxu0 %v991
  %v1051 = vpop.f32.mrb[0].mxu0
  %v1052 = vadd.f32 %v956, %v1051
  %v1053 = vpop.f32.mrb[0].mxu0
  %v1054 = vadd.f32 %v956, %v1053
  %v1055 = vpop.f32.mrb[0].mxu0
  %v1056 = vadd.f32 %v961, %v1055
  %v1057 = vpop.f32.mrb[0].mxu0
  %v1058 = vadd.f32 %v961, %v1057
  %1059 = vmatprep.mubr.bf16.mxu0 0
  %1060 = vmatmul.mubr.bf16.gmra.mrb[0].mxu0 %v992
  %v1061 = vpop.f32.mrb[0].mxu0
  %v1062 = vadd.f32 %v966, %v1061
  %v1063 = vpop.f32.mrb[0].mxu0
  %v1064 = vadd.f32 %v966, %v1063
  %v1065 = vpop.f32.mrb[0].mxu0
  %v1066 = vadd.f32 %v971, %v1065
  %v1067 = vpop.f32.mrb[0].mxu0
  %v1068 = vadd.f32 %v971, %v1067
  %1069 = vdwg.mxu0
  %1070 = vmatprep.subr.bf16.mxu0 %v856
  %1071 = vmatpush1.bf16.msra.mxu0 %v855
  %1072 = vmatprep.subr.bf16.mxu0 %v864
  %1073 = vmatpush1.bf16.msra.mxu0 %v863
  %1074 = vmatprep.subr.bf16.mxu0 %v872
  %1075 = vmatpush1.bf16.msra.mxu0 %v871
  %1076 = vmatprep.subr.bf16.mxu0 %v880
  %1077 = vmatpush1.bf16.msra.mxu0 %v879
  %1078 = vmatprep.subr.bf16.mxu0 %v888
  %1079 = vmatpush1.bf16.msra.mxu0 %v887
  %1080 = vmatprep.subr.bf16.mxu0 %v896
  %1081 = vmatpush1.bf16.msra.mxu0 %v895
  %1082 = vmatprep.subr.bf16.mxu0 %v904
  %1083 = vmatpush1.bf16.msra.mxu0 %v903
  %1084 = vmatprep.subr.bf16.mxu0 %v912
  %1085 = vmatpush1.bf16.msra.mxu0 %v911
  %1086 = vmatprep.subr.bf16.mxu0 0
  %1087 = vmatpush1.bf16.msra.mxu0 0
  %1088 = vmatprep.subr.bf16.mxu0 0
  %1089 = vmatpush1.bf16.msra.mxu0 0
  %1090 = vmatprep.subr.bf16.mxu0 0
  %1091 = vmatpush1.bf16.msra.mxu0 0
  %1092 = vmatprep.subr.bf16.mxu0 0
  %1093 = vmatpush1.bf16.msra.mxu0 0
  %1094 = vmatprep.subr.bf16.mxu0 0
  %1095 = vmatpush1.bf16.msra.mxu0 0
  %1096 = vmatprep.subr.bf16.mxu0 0
  %1097 = vmatpush1.bf16.msra.mxu0 0
  %1098 = vmatprep.subr.bf16.mxu0 0
  %1099 = vmatpush1.bf16.msra.mxu0 0
  %1100 = vmatprep.subr.bf16.mxu0 0
  %1101 = vmatpush1.bf16.msra.mxu0 0
  %1102 = vmatprep.mubr.bf16.mxu0 0
  %1103 = vmatmul.mubr.bf16.gmra.mrb[0].mxu0 %v989
  %v1104 = vpop.f32.mrb[0].mxu0
  %v1105 = vadd.f32 %v936, %v1104
  %v1106 = vpop.f32.mrb[0].mxu0
  %v1107 = vadd.f32 %v936, %v1106
  %v1108 = vpop.f32.mrb[0].mxu0
  %v1109 = vadd.f32 %v941, %v1108
  %v1110 = vpop.f32.mrb[0].mxu0
  %v1111 = vadd.f32 %v941, %v1110
  %1112 = vmatprep.mubr.bf16.mxu0 0
  %1113 = vmatmul.mubr.bf16.gmra.mrb[0].mxu0 %v990
  %v1114 = vpop.f32.mrb[0].mxu0
  %v1115 = vadd.f32 %v946, %v1114
  %v1116 = vpop.f32.mrb[0].mxu0
  %v1117 = vadd.f32 %v946, %v1116
  %v1118 = vpop.f32.mrb[0].mxu0
  %v1119 = vadd.f32 %v951, %v1118
  %v1120 = vpop.f32.mrb[0].mxu0
  %v1121 = vadd.f32 %v951, %v1120
  %1122 = vmatprep.mubr.bf16.mxu0 0
  %1123 = vmatmul.mubr.bf16.gmra.mrb[0].mxu0 %v991
  %v1124 = vpop.f32.mrb[0].mxu0
  %v1125 = vadd.f32 %v956, %v1124
  %v1126 = vpop.f32.mrb[0].mxu0
  %v1127 = vadd.f32 %v956, %v1126
  %v1128 = vpop.f32.mrb[0].mxu0
  %v1129 = vadd.f32 %v961, %v1128
  %v1130 = vpop.f32.mrb[0].mxu0
  %v1131 = vadd.f32 %v961, %v1130
  %1132 = vmatprep.mubr.bf16.mxu0 0
  %1133 = vmatmul.mubr.bf16.gmra.mrb[0].mxu0 %v992
  %v1134 = vpop.f32.mrb[0].mxu0
  %v1135 = vadd.f32 %v966, %v1134
  %v1136 = vpop.f32.mrb[0].mxu0
  %v1137 = vadd.f32 %v966, %v1136
  %v1138 = vpop.f32.mrb[0].mxu0
  %v1139 = vadd.f32 %v971, %v1138
  %v1140 = vpop.f32.mrb[0].mxu0
  %v1141 = vadd.f32 %v971, %v1140
  %1142 = vdwg.mxu0
  %1143 = vmatprep.subr.bf16.mxu0 %v858
  %1144 = vmatpush1.bf16.msra.mxu0 %v857
  %1145 = vmatprep.subr.bf16.mxu0 %v866
  %1146 = vmatpush1.bf16.msra.mxu0 %v865
  %1147 = vmatprep.subr.bf16.mxu0 %v874
  %1148 = vmatpush1.bf16.msra.mxu0 %v873
  %1149 = vmatprep.subr.bf16.mxu0 %v882
  %1150 = vmatpush1.bf16.msra.mxu0 %v881
  %1151 = vmatprep.subr.bf16.mxu0 %v890
  %1152 = vmatpush1.bf16.msra.mxu0 %v889
  %1153 = vmatprep.subr.bf16.mxu0 %v898
  %1154 = vmatpush1.bf16.msra.mxu0 %v897
  %1155 = vmatprep.subr.bf16.mxu0 %v906
  %1156 = vmatpush1.bf16.msra.mxu0 %v905
  %1157 = vmatprep.subr.bf16.mxu0 %v914
  %1158 = vmatpush1.bf16.msra.mxu0 %v913
  %1159 = vmatprep.subr.bf16.mxu0 0
  %1160 = vmatpush1.bf16.msra.mxu0 0
  %1161 = vmatprep.subr.bf16.mxu0 0
  %1162 = vmatpush1.bf16.msra.mxu0 0
  %1163 = vmatprep.subr.bf16.mxu0 0
  %1164 = vmatpush1.bf16.msra.mxu0 0
  %1165 = vmatprep.subr.bf16.mxu0 0
  %1166 = vmatpush1.bf16.msra.mxu0 0
  %1167 = vmatprep.subr.bf16.mxu0 0
  %1168 = vmatpush1.bf16.msra.mxu0 0
  %1169 = vmatprep.subr.bf16.mxu0 0
  %1170 = vmatpush1.bf16.msra.mxu0 0
  %1171 = vmatprep.subr.bf16.mxu0 0
  %1172 = vmatpush1.bf16.msra.mxu0 0
  %1173 = vmatprep.subr.bf16.mxu0 0
  %1174 = vmatpush1.bf16.msra.mxu0 0
  %1175 = vmatprep.mubr.bf16.mxu0 0
  %1176 = vmatmul.mubr.bf16.gmra.mrb[0].mxu0 %v989
  %v1177 = vpop.f32.mrb[0].mxu0
  %v1178 = vadd.f32 %v936, %v1177
  %v1179 = vpop.f32.mrb[0].mxu0
  %v1180 = vadd.f32 %v936, %v1179
  %v1181 = vpop.f32.mrb[0].mxu0
  %v1182 = vadd.f32 %v941, %v1181
  %v1183 = vpop.f32.mrb[0].mxu0
  %v1184 = vadd.f32 %v941, %v1183
  %1185 = vmatprep.mubr.bf16.mxu0 0
  %1186 = vmatmul.mubr.bf16.gmra.mrb[0].mxu0 %v990
  %v1187 = vpop.f32.mrb[0].mxu0
  %v1188 = vadd.f32 %v946, %v1187
  %v1189 = vpop.f32.mrb[0].mxu0
  %v1190 = vadd.f32 %v946, %v1189
  %v1191 = vpop.f32.mrb[0].mxu0
  %v1192 = vadd.f32 %v951, %v1191
  %v1193 = vpop.f32.mrb[0].mxu0
  %v1194 = vadd.f32 %v951, %v1193
  %1195 = vmatprep.mubr.bf16.mxu0 0
  %1196 = vmatmul.mubr.bf16.gmra.mrb[0].mxu0 %v991
  %v1197 = vpop.f32.mrb[0].mxu0
  %v1198 = vadd.f32 %v956, %v1197
  %v1199 = vpop.f32.mrb[0].mxu0
  %v1200 = vadd.f32 %v956, %v1199
  %v1201 = vpop.f32.mrb[0].mxu0
  %v1202 = vadd.f32 %v961, %v1201
  %v1203 = vpop.f32.mrb[0].mxu0
  %v1204 = vadd.f32 %v961, %v1203
  %1205 = vmatprep.mubr.bf16.mxu0 0
  %1206 = vmatmul.mubr.bf16.gmra.mrb[0].mxu0 %v992
  %v1207 = vpop.f32.mrb[0].mxu0
  %v1208 = vadd.f32 %v966, %v1207
  %v1209 = vpop.f32.mrb[0].mxu0
  %v1210 = vadd.f32 %v966, %v1209
  %v1211 = vpop.f32.mrb[0].mxu0
  %v1212 = vadd.f32 %v971, %v1211
  %v1213 = vpop.f32.mrb[0].mxu0
  %v1214 = vadd.f32 %v971, %v1213
  %1215 = vdwg.mxu0
  %1216 = vmatprep.subr.bf16.mxu0 %v860
  %1217 = vmatpush1.bf16.msra.mxu0 %v859
  %1218 = vmatprep.subr.bf16.mxu0 %v868
  %1219 = vmatpush1.bf16.msra.mxu0 %v867
  %1220 = vmatprep.subr.bf16.mxu0 %v876
  %1221 = vmatpush1.bf16.msra.mxu0 %v875
  %1222 = vmatprep.subr.bf16.mxu0 %v884
  %1223 = vmatpush1.bf16.msra.mxu0 %v883
  %1224 = vmatprep.subr.bf16.mxu0 %v892
  %1225 = vmatpush1.bf16.msra.mxu0 %v891
  %1226 = vmatprep.subr.bf16.mxu0 %v900
  %1227 = vmatpush1.bf16.msra.mxu0 %v899
  %1228 = vmatprep.subr.bf16.mxu0 %v908
  %1229 = vmatpush1.bf16.msra.mxu0 %v907
  %1230 = vmatprep.subr.bf16.mxu0 %v916
  %1231 = vmatpush1.bf16.msra.mxu0 %v915
  %1232 = vmatprep.subr.bf16.mxu0 0
  %1233 = vmatpush1.bf16.msra.mxu0 0
  %1234 = vmatprep.subr.bf16.mxu0 0
  %1235 = vmatpush1.bf16.msra.mxu0 0
  %1236 = vmatprep.subr.bf16.mxu0 0
  %1237 = vmatpush1.bf16.msra.mxu0 0
  %1238 = vmatprep.subr.bf16.mxu0 0
  %1239 = vmatpush1.bf16.msra.mxu0 0
  %1240 = vmatprep.subr.bf16.mxu0 0
  %1241 = vmatpush1.bf16.msra.mxu0 0
  %1242 = vmatprep.subr.bf16.mxu0 0
  %1243 = vmatpush1.bf16.msra.mxu0 0
  %1244 = vmatprep.subr.bf16.mxu0 0
  %1245 = vmatpush1.bf16.msra.mxu0 0
  %1246 = vmatprep.subr.bf16.mxu0 0
  %1247 = vmatpush1.bf16.msra.mxu0 0
  %1248 = vmatprep.mubr.bf16.mxu0 0
  %1249 = vmatmul.mubr.bf16.gmra.mrb[0].mxu0 %v989
  %v1250 = vpop.f32.mrb[0].mxu0
  %v1251 = vadd.f32 %v936, %v1250
  %v1252 = vpop.f32.mrb[0].mxu0
  %v1253 = vadd.f32 %v936, %v1252
  %v1254 = vpop.f32.mrb[0].mxu0
  %v1255 = vadd.f32 %v941, %v1254
  %v1256 = vpop.f32.mrb[0].mxu0
  %v1257 = vadd.f32 %v941, %v1256
  %1258 = vmatprep.mubr.bf16.mxu0 0
  %1259 = vmatmul.mubr.bf16.gmra.mrb[0].mxu0 %v990
  %v1260 = vpop.f32.mrb[0].mxu0
  %v1261 = vadd.f32 %v946, %v1260
  %v1262 = vpop.f32.mrb[0].mxu0
  %v1263 = vadd.f32 %v946, %v1262
  %v1264 = vpop.f32.mrb[0].mxu0
  %v1265 = vadd.f32 %v951, %v1264
  %v1266 = vpop.f32.mrb[0].mxu0
  %v1267 = vadd.f32 %v951, %v1266
  %1268 = vmatprep.mubr.bf16.mxu0 0
  %1269 = vmatmul.mubr.bf16.gmra.mrb[0].mxu0 %v991
  %v1270 = vpop.f32.mrb[0].mxu0
  %v1271 = vadd.f32 %v956, %v1270
  %v1272 = vpop.f32.mrb[0].mxu0
  %v1273 = vadd.f32 %v956, %v1272
  %v1274 = vpop.f32.mrb[0].mxu0
  %v1275 = vadd.f32 %v961, %v1274
  %v1276 = vpop.f32.mrb[0].mxu0
  %v1277 = vadd.f32 %v961, %v1276
  %1278 = vmatprep.mubr.bf16.mxu0 0
  %1279 = vmatmul.mubr.bf16.gmra.mrb[0].mxu0 %v992
  %v1280 = vpop.f32.mrb[0].mxu0
  %v1281 = vadd.f32 %v966, %v1280
  %v1282 = vpop.f32.mrb[0].mxu0
  %v1283 = vadd.f32 %v966, %v1282
  %v1284 = vpop.f32.mrb[0].mxu0
  %v1285 = vadd.f32 %v971, %v1284
  %v1286 = vpop.f32.mrb[0].mxu0
  %v1287 = vadd.f32 %v971, %v1286
  %1288 = vdwg.mxu0
  %v1289 = vmax.f32 %v1032, 0.0
  %v1290 = vmax.f32 %v1034, 0.0
  %v1291 = vmax.f32 %v1105, 0.0
  %v1292 = vmax.f32 %v1107, 0.0
  %v1293 = vmax.f32 %v1178, 0.0
  %v1294 = vmax.f32 %v1180, 0.0
  %v1295 = vmax.f32 %v1251, 0.0
  %v1296 = vmax.f32 %v1253, 0.0
  %v1297 = vmax.f32 %v1036, 0.0
  %v1298 = vmax.f32 %v1038, 0.0
  %v1299 = vmax.f32 %v1109, 0.0
  %v1300 = vmax.f32 %v1111, 0.0
  %v1301 = vmax.f32 %v1182, 0.0
  %v1302 = vmax.f32 %v1184, 0.0
  %v1303 = vmax.f32 %v1255, 0.0
  %v1304 = vmax.f32 %v1257, 0.0
  %v1305 = vmax.f32 %v1042, 0.0
  %v1306 = vmax.f32 %v1044, 0.0
  %v1307 = vmax.f32 %v1115, 0.0
  %v1308 = vmax.f32 %v1117, 0.0
  %v1309 = vmax.f32 %v1188, 0.0
  %v1310 = vmax.f32 %v1190, 0.0
  %v1311 = vmax.f32 %v1261, 0.0
  %v1312 = vmax.f32 %v1263, 0.0
  %v1313 = vmax.f32 %v1046, 0.0
  %v1314 = vmax.f32 %v1048, 0.0
  %v1315 = vmax.f32 %v1119, 0.0
  %v1316 = vmax.f32 %v1121, 0.0
  %v1317 = vmax.f32 %v1192, 0.0
  %v1318 = vmax.f32 %v1194, 0.0
  %v1319 = vmax.f32 %v1265, 0.0
  %v1320 = vmax.f32 %v1267, 0.0
  %v1321 = vmax.f32 %v1052, 0.0
  %v1322 = vmax.f32 %v1054, 0.0
  %v1323 = vmax.f32 %v1125, 0.0
  %v1324 = vmax.f32 %v1127, 0.0
  %v1325 = vmax.f32 %v1198, 0.0
  %v1326 = vmax.f32 %v1200, 0.0
  %v1327 = vmax.f32 %v1271, 0.0
  %v1328 = vmax.f32 %v1273, 0.0
  %v1329 = vmax.f32 %v1056, 0.0
  %v1330 = vmax.f32 %v1058, 0.0
  %v1331 = vmax.f32 %v1129, 0.0
  %v1332 = vmax.f32 %v1131, 0.0
  %v1333 = vmax.f32 %v1202, 0.0
  %v1334 = vmax.f32 %v1204, 0.0
  %v1335 = vmax.f32 %v1275, 0.0
  %v1336 = vmax.f32 %v1277, 0.0
  %v1337 = vmax.f32 %v1062, 0.0
  %v1338 = vmax.f32 %v1064, 0.0
  %v1339 = vmax.f32 %v1135, 0.0
  %v1340 = vmax.f32 %v1137, 0.0
  %v1341 = vmax.f32 %v1208, 0.0
  %v1342 = vmax.f32 %v1210, 0.0
  %v1343 = vmax.f32 %v1281, 0.0
  %v1344 = vmax.f32 %v1283, 0.0
  %v1345 = vmax.f32 %v1066, 0.0
  %v1346 = vmax.f32 %v1068, 0.0
  %v1347 = vmax.f32 %v1139, 0.0
  %v1348 = vmax.f32 %v1141, 0.0
  %v1349 = vmax.f32 %v1212, 0.0
  %v1350 = vmax.f32 %v1214, 0.0
  %v1351 = vmax.f32 %v1285, 0.0
  %v1352 = vmax.f32 %v1287, 0.0
  %v1353 = vpack.c.bf16 %v1297, %v1289
  %v1354 = vpack.c.bf16 %v1298, %v1290
  %v1355 = vpack.c.bf16 %v1299, %v1291
  %v1356 = vpack.c.bf16 %v1300, %v1292
  %v1357 = vpack.c.bf16 %v1301, %v1293
  %v1358 = vpack.c.bf16 %v1302, %v1294
  %v1359 = vpack.c.bf16 %v1303, %v1295
  %v1360 = vpack.c.bf16 %v1304, %v1296
  %v1361 = vpack.c.bf16 %v1313, %v1305
  %v1362 = vpack.c.bf16 %v1314, %v1306
  %v1363 = vpack.c.bf16 %v1315, %v1307
  %v1364 = vpack.c.bf16 %v1316, %v1308
  %v1365 = vpack.c.bf16 %v1317, %v1309
  %v1366 = vpack.c.bf16 %v1318, %v1310
  %v1367 = vpack.c.bf16 %v1319, %v1311
  %v1368 = vpack.c.bf16 %v1320, %v1312
  %v1369 = vpack.c.bf16 %v1329, %v1321
  %v1370 = vpack.c.bf16 %v1330, %v1322
  %v1371 = vpack.c.bf16 %v1331, %v1323
  %v1372 = vpack.c.bf16 %v1332, %v1324
  %v1373 = vpack.c.bf16 %v1333, %v1325
  %v1374 = vpack.c.bf16 %v1334, %v1326
  %v1375 = vpack.c.bf16 %v1335, %v1327
  %v1376 = vpack.c.bf16 %v1336, %v1328
  %v1377 = vpack.c.bf16 %v1345, %v1337
  %v1378 = vpack.c.bf16 %v1346, %v1338
  %v1379 = vpack.c.bf16 %v1347, %v1339
  %v1380 = vpack.c.bf16 %v1348, %v1340
  %v1381 = vpack.c.bf16 %v1349, %v1341
  %v1382 = vpack.c.bf16 %v1350, %v1342
  %v1383 = vpack.c.bf16 %v1351, %v1343
  %v1384 = vpack.c.bf16 %v1352, %v1344
  %v1385 = vld [vmem:[%s5] sm:$0xf]
  %v1386 = vld [vmem:[%s5 + $0x4] sm:$0xf]
  %v1387 = vld [vmem:[%s5 + $0x8] sm:$0xf]
  %v1388 = vld [vmem:[%s5 + $0xc] sm:$0xf]
  %v1389 = vld [vmem:[%s5 + $0x10] sm:$0xf]
  %v1390 = vld [vmem:[%s5 + $0x14] sm:$0xf]
  %v1391 = vld [vmem:[%s5 + $0x18] sm:$0xf]
  %v1392 = vld [vmem:[%s5 + $0x1c] sm:$0xf]
  %v1393 = vld [vmem:[%s6] sm:$0xff]
  %v1394 = vld [vmem:[%s6 + $0x8] sm:$0xff]
  %v1395 = vld [vmem:[%s6 + $0x10] sm:$0xff]
  %v1396 = vld [vmem:[%s6 + $0x18] sm:$0xff]
  %v1397 = vld [vmem:[%s6 + $0x20] sm:$0xff]
  %v1398 = vld [vmem:[%s6 + $0x28] sm:$0xff]
  %v1399 = vld [vmem:[%s6 + $0x30] sm:$0xff]
  %v1400 = vld [vmem:[%s6 + $0x38] sm:$0xff]
  %1402 = vset.pattern.permute.xlu0 0
  %1403 = vperm.xlu0 %1402, %v1393
  %v1404 = vpop.permute.xlu0 %1403
  %1407 = vset.pattern.permute.xlu0 0
  %1408 = vperm.xlu0 %1407, %v1394
  %v1409 = vpop.permute.xlu0 %1408
  %1412 = vset.pattern.permute.xlu0 0
  %1413 = vperm.xlu0 %1412, %v1395
  %v1414 = vpop.permute.xlu0 %1413
  %1417 = vset.pattern.permute.xlu0 0
  %1418 = vperm.xlu0 %1417, %v1396
  %v1419 = vpop.permute.xlu0 %1418
  %1422 = vset.pattern.permute.xlu0 0
  %1423 = vperm.xlu0 %1422, %v1397
  %v1424 = vpop.permute.xlu0 %1423
  %1427 = vset.pattern.permute.xlu0 0
  %1428 = vperm.xlu0 %1427, %v1398
  %v1429 = vpop.permute.xlu0 %1428
  %1432 = vset.pattern.permute.xlu0 0
  %1433 = vperm.xlu0 %1432, %v1399
  %v1434 = vpop.permute.xlu0 %1433
  %1437 = vset.pattern.permute.xlu0 0
  %1438 = vperm.xlu0 %1437, %v1400
  %v1439 = vpop.permute.xlu0 %1438
  %v1449 = vunpack.c.l.b16 %v1385
  %v1450 = vunpack.c.l.b16 %v1386
  %v1451 = vunpack.c.l.b16 %v1387
  %v1452 = vunpack.c.l.b16 %v1388
  %v1453 = vunpack.c.l.b16 %v1389
  %v1454 = vunpack.c.l.b16 %v1390
  %v1455 = vunpack.c.l.b16 %v1391
  %v1456 = vunpack.c.l.b16 %v1392
  %v1457 = vpack.c.b16 %v1450, %v1449
  %v1458 = vpack.c.b16 %v1452, %v1451
  %v1459 = vpack.c.b16 %v1454, %v1453
  %v1460 = vpack.c.b16 %v1456, %v1455
  %vm1461 = vcmask 523264
  %v1463 = vsel %vm1461, %v1457, 0
  %v1466 = vsel %vm1461, %v1458, 0
  %v1469 = vsel %vm1461, %v1459, 0
  %v1472 = vsel %vm1461, %v1460, 0
  %1474 = vmatprep.subr.bf16.mxu0 %v1354
  %1475 = vmatpush1.bf16.msra.mxu0 %v1353
  %1476 = vmatprep.subr.bf16.mxu0 %v1362
  %1477 = vmatpush1.bf16.msra.mxu0 %v1361
  %1478 = vmatprep.subr.bf16.mxu0 %v1370
  %1479 = vmatpush1.bf16.msra.mxu0 %v1369
  %1480 = vmatprep.subr.bf16.mxu0 %v1378
  %1481 = vmatpush1.bf16.msra.mxu0 %v1377
  %1482 = vmatprep.subr.bf16.mxu0 0
  %1483 = vmatpush1.bf16.msra.mxu0 0
  %1484 = vmatprep.subr.bf16.mxu0 0
  %1485 = vmatpush1.bf16.msra.mxu0 0
  %1486 = vmatprep.subr.bf16.mxu0 0
  %1487 = vmatpush1.bf16.msra.mxu0 0
  %1488 = vmatprep.subr.bf16.mxu0 0
  %1489 = vmatpush1.bf16.msra.mxu0 0
  %1490 = vmatprep.subr.bf16.mxu0 0
  %1491 = vmatpush1.bf16.msra.mxu0 0
  %1492 = vmatprep.subr.bf16.mxu0 0
  %1493 = vmatpush1.bf16.msra.mxu0 0
  %1494 = vmatprep.subr.bf16.mxu0 0
  %1495 = vmatpush1.bf16.msra.mxu0 0
  %1496 = vmatprep.subr.bf16.mxu0 0
  %1497 = vmatpush1.bf16.msra.mxu0 0
  %1498 = vmatprep.subr.bf16.mxu0 0
  %1499 = vmatpush1.bf16.msra.mxu0 0
  %1500 = vmatprep.subr.bf16.mxu0 0
  %1501 = vmatpush1.bf16.msra.mxu0 0
  %1502 = vmatprep.subr.bf16.mxu0 0
  %1503 = vmatpush1.bf16.msra.mxu0 0
  %1504 = vmatprep.subr.bf16.mxu0 0
  %1505 = vmatpush1.bf16.msra.mxu0 0
  %1506 = vmatprep.mubr.bf16.mxu0 0
  %1507 = vmatmul.mubr.bf16.gmra.mrb[0].mxu0 %v1463
  %v1508 = vpop.f32.mrb[0].mxu0
  %v1509 = vadd.f32 %v1404, %v1508
  %v1510 = vpop.f32.mrb[0].mxu0
  %v1511 = vadd.f32 %v1404, %v1510
  %v1512 = vpop.f32.mrb[0].mxu0
  %v1513 = vadd.f32 %v1409, %v1512
  %v1514 = vpop.f32.mrb[0].mxu0
  %v1515 = vadd.f32 %v1409, %v1514
  %1516 = vmatprep.mubr.bf16.mxu0 0
  %1517 = vmatmul.mubr.bf16.gmra.mrb[0].mxu0 %v1466
  %v1518 = vpop.f32.mrb[0].mxu0
  %v1519 = vadd.f32 %v1414, %v1518
  %v1520 = vpop.f32.mrb[0].mxu0
  %v1521 = vadd.f32 %v1414, %v1520
  %v1522 = vpop.f32.mrb[0].mxu0
  %v1523 = vadd.f32 %v1419, %v1522
  %v1524 = vpop.f32.mrb[0].mxu0
  %v1525 = vadd.f32 %v1419, %v1524
  %1526 = vmatprep.mubr.bf16.mxu0 0
  %1527 = vmatmul.mubr.bf16.gmra.mrb[0].mxu0 %v1469
  %v1528 = vpop.f32.mrb[0].mxu0
  %v1529 = vadd.f32 %v1424, %v1528
  %v1530 = vpop.f32.mrb[0].mxu0
  %v1531 = vadd.f32 %v1424, %v1530
  %v1532 = vpop.f32.mrb[0].mxu0
  %v1533 = vadd.f32 %v1429, %v1532
  %v1534 = vpop.f32.mrb[0].mxu0
  %v1535 = vadd.f32 %v1429, %v1534
  %1536 = vmatprep.mubr.bf16.mxu0 0
  %1537 = vmatmul.mubr.bf16.gmra.mrb[0].mxu0 %v1472
  %v1538 = vpop.f32.mrb[0].mxu0
  %v1539 = vadd.f32 %v1434, %v1538
  %v1540 = vpop.f32.mrb[0].mxu0
  %v1541 = vadd.f32 %v1434, %v1540
  %v1542 = vpop.f32.mrb[0].mxu0
  %v1543 = vadd.f32 %v1439, %v1542
  %v1544 = vpop.f32.mrb[0].mxu0
  %v1545 = vadd.f32 %v1439, %v1544
  %1546 = vdwg.mxu0
  %1547 = vmatprep.subr.bf16.mxu0 %v1356
  %1548 = vmatpush1.bf16.msra.mxu0 %v1355
  %1549 = vmatprep.subr.bf16.mxu0 %v1364
  %1550 = vmatpush1.bf16.msra.mxu0 %v1363
  %1551 = vmatprep.subr.bf16.mxu0 %v1372
  %1552 = vmatpush1.bf16.msra.mxu0 %v1371
  %1553 = vmatprep.subr.bf16.mxu0 %v1380
  %1554 = vmatpush1.bf16.msra.mxu0 %v1379
  %1555 = vmatprep.subr.bf16.mxu0 0
  %1556 = vmatpush1.bf16.msra.mxu0 0
  %1557 = vmatprep.subr.bf16.mxu0 0
  %1558 = vmatpush1.bf16.msra.mxu0 0
  %1559 = vmatprep.subr.bf16.mxu0 0
  %1560 = vmatpush1.bf16.msra.mxu0 0
  %1561 = vmatprep.subr.bf16.mxu0 0
  %1562 = vmatpush1.bf16.msra.mxu0 0
  %1563 = vmatprep.subr.bf16.mxu0 0
  %1564 = vmatpush1.bf16.msra.mxu0 0
  %1565 = vmatprep.subr.bf16.mxu0 0
  %1566 = vmatpush1.bf16.msra.mxu0 0
  %1567 = vmatprep.subr.bf16.mxu0 0
  %1568 = vmatpush1.bf16.msra.mxu0 0
  %1569 = vmatprep.subr.bf16.mxu0 0
  %1570 = vmatpush1.bf16.msra.mxu0 0
  %1571 = vmatprep.subr.bf16.mxu0 0
  %1572 = vmatpush1.bf16.msra.mxu0 0
  %1573 = vmatprep.subr.bf16.mxu0 0
  %1574 = vmatpush1.bf16.msra.mxu0 0
  %1575 = vmatprep.subr.bf16.mxu0 0
  %1576 = vmatpush1.bf16.msra.mxu0 0
  %1577 = vmatprep.subr.bf16.mxu0 0
  %1578 = vmatpush1.bf16.msra.mxu0 0
  %1579 = vmatprep.mubr.bf16.mxu0 0
  %1580 = vmatmul.mubr.bf16.gmra.mrb[0].mxu0 %v1463
  %v1581 = vpop.f32.mrb[0].mxu0
  %v1582 = vadd.f32 %v1404, %v1581
  %v1583 = vpop.f32.mrb[0].mxu0
  %v1584 = vadd.f32 %v1404, %v1583
  %v1585 = vpop.f32.mrb[0].mxu0
  %v1586 = vadd.f32 %v1409, %v1585
  %v1587 = vpop.f32.mrb[0].mxu0
  %v1588 = vadd.f32 %v1409, %v1587
  %1589 = vmatprep.mubr.bf16.mxu0 0
  %1590 = vmatmul.mubr.bf16.gmra.mrb[0].mxu0 %v1466
  %v1591 = vpop.f32.mrb[0].mxu0
  %v1592 = vadd.f32 %v1414, %v1591
  %v1593 = vpop.f32.mrb[0].mxu0
  %v1594 = vadd.f32 %v1414, %v1593
  %v1595 = vpop.f32.mrb[0].mxu0
  %v1596 = vadd.f32 %v1419, %v1595
  %v1597 = vpop.f32.mrb[0].mxu0
  %v1598 = vadd.f32 %v1419, %v1597
  %1599 = vmatprep.mubr.bf16.mxu0 0
  %1600 = vmatmul.mubr.bf16.gmra.mrb[0].mxu0 %v1469
  %v1601 = vpop.f32.mrb[0].mxu0
  %v1602 = vadd.f32 %v1424, %v1601
  %v1603 = vpop.f32.mrb[0].mxu0
  %v1604 = vadd.f32 %v1424, %v1603
  %v1605 = vpop.f32.mrb[0].mxu0
  %v1606 = vadd.f32 %v1429, %v1605
  %v1607 = vpop.f32.mrb[0].mxu0
  %v1608 = vadd.f32 %v1429, %v1607
  %1609 = vmatprep.mubr.bf16.mxu0 0
  %1610 = vmatmul.mubr.bf16.gmra.mrb[0].mxu0 %v1472
  %v1611 = vpop.f32.mrb[0].mxu0
  %v1612 = vadd.f32 %v1434, %v1611
  %v1613 = vpop.f32.mrb[0].mxu0
  %v1614 = vadd.f32 %v1434, %v1613
  %v1615 = vpop.f32.mrb[0].mxu0
  %v1616 = vadd.f32 %v1439, %v1615
  %v1617 = vpop.f32.mrb[0].mxu0
  %v1618 = vadd.f32 %v1439, %v1617
  %1619 = vdwg.mxu0
  %1620 = vmatprep.subr.bf16.mxu0 %v1358
  %1621 = vmatpush1.bf16.msra.mxu0 %v1357
  %1622 = vmatprep.subr.bf16.mxu0 %v1366
  %1623 = vmatpush1.bf16.msra.mxu0 %v1365
  %1624 = vmatprep.subr.bf16.mxu0 %v1374
  %1625 = vmatpush1.bf16.msra.mxu0 %v1373
  %1626 = vmatprep.subr.bf16.mxu0 %v1382
  %1627 = vmatpush1.bf16.msra.mxu0 %v1381
  %1628 = vmatprep.subr.bf16.mxu0 0
  %1629 = vmatpush1.bf16.msra.mxu0 0
  %1630 = vmatprep.subr.bf16.mxu0 0
  %1631 = vmatpush1.bf16.msra.mxu0 0
  %1632 = vmatprep.subr.bf16.mxu0 0
  %1633 = vmatpush1.bf16.msra.mxu0 0
  %1634 = vmatprep.subr.bf16.mxu0 0
  %1635 = vmatpush1.bf16.msra.mxu0 0
  %1636 = vmatprep.subr.bf16.mxu0 0
  %1637 = vmatpush1.bf16.msra.mxu0 0
  %1638 = vmatprep.subr.bf16.mxu0 0
  %1639 = vmatpush1.bf16.msra.mxu0 0
  %1640 = vmatprep.subr.bf16.mxu0 0
  %1641 = vmatpush1.bf16.msra.mxu0 0
  %1642 = vmatprep.subr.bf16.mxu0 0
  %1643 = vmatpush1.bf16.msra.mxu0 0
  %1644 = vmatprep.subr.bf16.mxu0 0
  %1645 = vmatpush1.bf16.msra.mxu0 0
  %1646 = vmatprep.subr.bf16.mxu0 0
  %1647 = vmatpush1.bf16.msra.mxu0 0
  %1648 = vmatprep.subr.bf16.mxu0 0
  %1649 = vmatpush1.bf16.msra.mxu0 0
  %1650 = vmatprep.subr.bf16.mxu0 0
  %1651 = vmatpush1.bf16.msra.mxu0 0
  %1652 = vmatprep.mubr.bf16.mxu0 0
  %1653 = vmatmul.mubr.bf16.gmra.mrb[0].mxu0 %v1463
  %v1654 = vpop.f32.mrb[0].mxu0
  %v1655 = vadd.f32 %v1404, %v1654
  %v1656 = vpop.f32.mrb[0].mxu0
  %v1657 = vadd.f32 %v1404, %v1656
  %v1658 = vpop.f32.mrb[0].mxu0
  %v1659 = vadd.f32 %v1409, %v1658
  %v1660 = vpop.f32.mrb[0].mxu0
  %v1661 = vadd.f32 %v1409, %v1660
  %1662 = vmatprep.mubr.bf16.mxu0 0
  %1663 = vmatmul.mubr.bf16.gmra.mrb[0].mxu0 %v1466
  %v1664 = vpop.f32.mrb[0].mxu0
  %v1665 = vadd.f32 %v1414, %v1664
  %v1666 = vpop.f32.mrb[0].mxu0
  %v1667 = vadd.f32 %v1414, %v1666
  %v1668 = vpop.f32.mrb[0].mxu0
  %v1669 = vadd.f32 %v1419, %v1668
  %v1670 = vpop.f32.mrb[0].mxu0
  %v1671 = vadd.f32 %v1419, %v1670
  %1672 = vmatprep.mubr.bf16.mxu0 0
  %1673 = vmatmul.mubr.bf16.gmra.mrb[0].mxu0 %v1469
  %v1674 = vpop.f32.mrb[0].mxu0
  %v1675 = vadd.f32 %v1424, %v1674
  %v1676 = vpop.f32.mrb[0].mxu0
  %v1677 = vadd.f32 %v1424, %v1676
  %v1678 = vpop.f32.mrb[0].mxu0
  %v1679 = vadd.f32 %v1429, %v1678
  %v1680 = vpop.f32.mrb[0].mxu0
  %v1681 = vadd.f32 %v1429, %v1680
  %1682 = vmatprep.mubr.bf16.mxu0 0
  %1683 = vmatmul.mubr.bf16.gmra.mrb[0].mxu0 %v1472
  %v1684 = vpop.f32.mrb[0].mxu0
  %v1685 = vadd.f32 %v1434, %v1684
  %v1686 = vpop.f32.mrb[0].mxu0
  %v1687 = vadd.f32 %v1434, %v1686
  %v1688 = vpop.f32.mrb[0].mxu0
  %v1689 = vadd.f32 %v1439, %v1688
  %v1690 = vpop.f32.mrb[0].mxu0
  %v1691 = vadd.f32 %v1439, %v1690
  %1692 = vdwg.mxu0
  %1693 = vmatprep.subr.bf16.mxu0 %v1360
  %1694 = vmatpush1.bf16.msra.mxu0 %v1359
  %1695 = vmatprep.subr.bf16.mxu0 %v1368
  %1696 = vmatpush1.bf16.msra.mxu0 %v1367
  %1697 = vmatprep.subr.bf16.mxu0 %v1376
  %1698 = vmatpush1.bf16.msra.mxu0 %v1375
  %1699 = vmatprep.subr.bf16.mxu0 %v1384
  %1700 = vmatpush1.bf16.msra.mxu0 %v1383
  %1701 = vmatprep.subr.bf16.mxu0 0
  %1702 = vmatpush1.bf16.msra.mxu0 0
  %1703 = vmatprep.subr.bf16.mxu0 0
  %1704 = vmatpush1.bf16.msra.mxu0 0
  %1705 = vmatprep.subr.bf16.mxu0 0
  %1706 = vmatpush1.bf16.msra.mxu0 0
  %1707 = vmatprep.subr.bf16.mxu0 0
  %1708 = vmatpush1.bf16.msra.mxu0 0
  %1709 = vmatprep.subr.bf16.mxu0 0
  %1710 = vmatpush1.bf16.msra.mxu0 0
  %1711 = vmatprep.subr.bf16.mxu0 0
  %1712 = vmatpush1.bf16.msra.mxu0 0
  %1713 = vmatprep.subr.bf16.mxu0 0
  %1714 = vmatpush1.bf16.msra.mxu0 0
  %1715 = vmatprep.subr.bf16.mxu0 0
  %1716 = vmatpush1.bf16.msra.mxu0 0
  %1717 = vmatprep.subr.bf16.mxu0 0
  %1718 = vmatpush1.bf16.msra.mxu0 0
  %1719 = vmatprep.subr.bf16.mxu0 0
  %1720 = vmatpush1.bf16.msra.mxu0 0
  %1721 = vmatprep.subr.bf16.mxu0 0
  %1722 = vmatpush1.bf16.msra.mxu0 0
  %1723 = vmatprep.subr.bf16.mxu0 0
  %1724 = vmatpush1.bf16.msra.mxu0 0
  %1725 = vmatprep.mubr.bf16.mxu0 0
  %1726 = vmatmul.mubr.bf16.gmra.mrb[0].mxu0 %v1463
  %v1727 = vpop.f32.mrb[0].mxu0
  %v1728 = vadd.f32 %v1404, %v1727
  %v1729 = vpop.f32.mrb[0].mxu0
  %v1730 = vadd.f32 %v1404, %v1729
  %v1731 = vpop.f32.mrb[0].mxu0
  %v1732 = vadd.f32 %v1409, %v1731
  %v1733 = vpop.f32.mrb[0].mxu0
  %v1734 = vadd.f32 %v1409, %v1733
  %1735 = vmatprep.mubr.bf16.mxu0 0
  %1736 = vmatmul.mubr.bf16.gmra.mrb[0].mxu0 %v1466
  %v1737 = vpop.f32.mrb[0].mxu0
  %v1738 = vadd.f32 %v1414, %v1737
  %v1739 = vpop.f32.mrb[0].mxu0
  %v1740 = vadd.f32 %v1414, %v1739
  %v1741 = vpop.f32.mrb[0].mxu0
  %v1742 = vadd.f32 %v1419, %v1741
  %v1743 = vpop.f32.mrb[0].mxu0
  %v1744 = vadd.f32 %v1419, %v1743
  %1745 = vmatprep.mubr.bf16.mxu0 0
  %1746 = vmatmul.mubr.bf16.gmra.mrb[0].mxu0 %v1469
  %v1747 = vpop.f32.mrb[0].mxu0
  %v1748 = vadd.f32 %v1424, %v1747
  %v1749 = vpop.f32.mrb[0].mxu0
  %v1750 = vadd.f32 %v1424, %v1749
  %v1751 = vpop.f32.mrb[0].mxu0
  %v1752 = vadd.f32 %v1429, %v1751
  %v1753 = vpop.f32.mrb[0].mxu0
  %v1754 = vadd.f32 %v1429, %v1753
  %1755 = vmatprep.mubr.bf16.mxu0 0
  %1756 = vmatmul.mubr.bf16.gmra.mrb[0].mxu0 %v1472
  %v1757 = vpop.f32.mrb[0].mxu0
  %v1758 = vadd.f32 %v1434, %v1757
  %v1759 = vpop.f32.mrb[0].mxu0
  %v1760 = vadd.f32 %v1434, %v1759
  %v1761 = vpop.f32.mrb[0].mxu0
  %v1762 = vadd.f32 %v1439, %v1761
  %v1763 = vpop.f32.mrb[0].mxu0
  %v1764 = vadd.f32 %v1439, %v1763
  %1765 = vdwg.mxu0
  %v1766 = vmax.f32 %v1509, 0.0
  %v1767 = vmax.f32 %v1511, 0.0
  %v1768 = vmax.f32 %v1582, 0.0
  %v1769 = vmax.f32 %v1584, 0.0
  %v1770 = vmax.f32 %v1655, 0.0
  %v1771 = vmax.f32 %v1657, 0.0
  %v1772 = vmax.f32 %v1728, 0.0
  %v1773 = vmax.f32 %v1730, 0.0
  %v1774 = vmax.f32 %v1513, 0.0
  %v1775 = vmax.f32 %v1515, 0.0
  %v1776 = vmax.f32 %v1586, 0.0
  %v1777 = vmax.f32 %v1588, 0.0
  %v1778 = vmax.f32 %v1659, 0.0
  %v1779 = vmax.f32 %v1661, 0.0
  %v1780 = vmax.f32 %v1732, 0.0
  %v1781 = vmax.f32 %v1734, 0.0
  %v1782 = vmax.f32 %v1519, 0.0
  %v1783 = vmax.f32 %v1521, 0.0
  %v1784 = vmax.f32 %v1592, 0.0
  %v1785 = vmax.f32 %v1594, 0.0
  %v1786 = vmax.f32 %v1665, 0.0
  %v1787 = vmax.f32 %v1667, 0.0
  %v1788 = vmax.f32 %v1738, 0.0
  %v1789 = vmax.f32 %v1740, 0.0
  %v1790 = vmax.f32 %v1523, 0.0
  %v1791 = vmax.f32 %v1525, 0.0
  %v1792 = vmax.f32 %v1596, 0.0
  %v1793 = vmax.f32 %v1598, 0.0
  %v1794 = vmax.f32 %v1669, 0.0
  %v1795 = vmax.f32 %v1671, 0.0
  %v1796 = vmax.f32 %v1742, 0.0
  %v1797 = vmax.f32 %v1744, 0.0
  %v1798 = vmax.f32 %v1529, 0.0
  %v1799 = vmax.f32 %v1531, 0.0
  %v1800 = vmax.f32 %v1602, 0.0
  %v1801 = vmax.f32 %v1604, 0.0
  %v1802 = vmax.f32 %v1675, 0.0
  %v1803 = vmax.f32 %v1677, 0.0
  %v1804 = vmax.f32 %v1748, 0.0
  %v1805 = vmax.f32 %v1750, 0.0
  %v1806 = vmax.f32 %v1533, 0.0
  %v1807 = vmax.f32 %v1535, 0.0
  %v1808 = vmax.f32 %v1606, 0.0
  %v1809 = vmax.f32 %v1608, 0.0
  %v1810 = vmax.f32 %v1679, 0.0
  %v1811 = vmax.f32 %v1681, 0.0
  %v1812 = vmax.f32 %v1752, 0.0
  %v1813 = vmax.f32 %v1754, 0.0
  %v1814 = vmax.f32 %v1539, 0.0
  %v1815 = vmax.f32 %v1541, 0.0
  %v1816 = vmax.f32 %v1612, 0.0
  %v1817 = vmax.f32 %v1614, 0.0
  %v1818 = vmax.f32 %v1685, 0.0
  %v1819 = vmax.f32 %v1687, 0.0
  %v1820 = vmax.f32 %v1758, 0.0
  %v1821 = vmax.f32 %v1760, 0.0
  %v1822 = vmax.f32 %v1543, 0.0
  %v1823 = vmax.f32 %v1545, 0.0
  %v1824 = vmax.f32 %v1616, 0.0
  %v1825 = vmax.f32 %v1618, 0.0
  %v1826 = vmax.f32 %v1689, 0.0
  %v1827 = vmax.f32 %v1691, 0.0
  %v1828 = vmax.f32 %v1762, 0.0
  %v1829 = vmax.f32 %v1764, 0.0
  %v1830 = vpack.c.bf16 %v1774, %v1766
  %v1831 = vpack.c.bf16 %v1775, %v1767
  %v1832 = vpack.c.bf16 %v1776, %v1768
  %v1833 = vpack.c.bf16 %v1777, %v1769
  %v1834 = vpack.c.bf16 %v1778, %v1770
  %v1835 = vpack.c.bf16 %v1779, %v1771
  %v1836 = vpack.c.bf16 %v1780, %v1772
  %v1837 = vpack.c.bf16 %v1781, %v1773
  %v1838 = vpack.c.bf16 %v1790, %v1782
  %v1839 = vpack.c.bf16 %v1791, %v1783
  %v1840 = vpack.c.bf16 %v1792, %v1784
  %v1841 = vpack.c.bf16 %v1793, %v1785
  %v1842 = vpack.c.bf16 %v1794, %v1786
  %v1843 = vpack.c.bf16 %v1795, %v1787
  %v1844 = vpack.c.bf16 %v1796, %v1788
  %v1845 = vpack.c.bf16 %v1797, %v1789
  %v1846 = vpack.c.bf16 %v1806, %v1798
  %v1847 = vpack.c.bf16 %v1807, %v1799
  %v1848 = vpack.c.bf16 %v1808, %v1800
  %v1849 = vpack.c.bf16 %v1809, %v1801
  %v1850 = vpack.c.bf16 %v1810, %v1802
  %v1851 = vpack.c.bf16 %v1811, %v1803
  %v1852 = vpack.c.bf16 %v1812, %v1804
  %v1853 = vpack.c.bf16 %v1813, %v1805
  %v1854 = vpack.c.bf16 %v1822, %v1814
  %v1855 = vpack.c.bf16 %v1823, %v1815
  %v1856 = vpack.c.bf16 %v1824, %v1816
  %v1857 = vpack.c.bf16 %v1825, %v1817
  %v1858 = vpack.c.bf16 %v1826, %v1818
  %v1859 = vpack.c.bf16 %v1827, %v1819
  %v1860 = vpack.c.bf16 %v1828, %v1820
  %v1861 = vpack.c.bf16 %v1829, %v1821
  %v1862 = vld [vmem:[%s7] sm:$0xf]
  %v1863 = vld [vmem:[%s8] sm:$0xff]
  %1865 = vset.pattern.permute.xlu0 0
  %1866 = vperm.xlu0 %1865, %v1863
  %v1867 = vpop.permute.xlu0 %1866
  %v1870 = vsel %vm1461, %v1862, 0
  %1872 = vmatprep.subr.bf16.mxu0 %v1831
  %1873 = vmatpush1.bf16.msra.mxu0 %v1830
  %1874 = vmatprep.subr.bf16.mxu0 %v1839
  %1875 = vmatpush1.bf16.msra.mxu0 %v1838
  %1876 = vmatprep.subr.bf16.mxu0 %v1847
  %1877 = vmatpush1.bf16.msra.mxu0 %v1846
  %1878 = vmatprep.subr.bf16.mxu0 %v1855
  %1879 = vmatpush1.bf16.msra.mxu0 %v1854
  %1880 = vmatprep.subr.bf16.mxu0 0
  %1881 = vmatpush1.bf16.msra.mxu0 0
  %1882 = vmatprep.subr.bf16.mxu0 0
  %1883 = vmatpush1.bf16.msra.mxu0 0
  %1884 = vmatprep.subr.bf16.mxu0 0
  %1885 = vmatpush1.bf16.msra.mxu0 0
  %1886 = vmatprep.subr.bf16.mxu0 0
  %1887 = vmatpush1.bf16.msra.mxu0 0
  %1888 = vmatprep.subr.bf16.mxu0 0
  %1889 = vmatpush1.bf16.msra.mxu0 0
  %1890 = vmatprep.subr.bf16.mxu0 0
  %1891 = vmatpush1.bf16.msra.mxu0 0
  %1892 = vmatprep.subr.bf16.mxu0 0
  %1893 = vmatpush1.bf16.msra.mxu0 0
  %1894 = vmatprep.subr.bf16.mxu0 0
  %1895 = vmatpush1.bf16.msra.mxu0 0
  %1896 = vmatprep.subr.bf16.mxu0 0
  %1897 = vmatpush1.bf16.msra.mxu0 0
  %1898 = vmatprep.subr.bf16.mxu0 0
  %1899 = vmatpush1.bf16.msra.mxu0 0
  %1900 = vmatprep.subr.bf16.mxu0 0
  %1901 = vmatpush1.bf16.msra.mxu0 0
  %1902 = vmatprep.subr.bf16.mxu0 0
  %1903 = vmatpush1.bf16.msra.mxu0 0
  %1904 = vmatprep.mubr.bf16.mxu0 0
  %1905 = vmatmul.mubr.bf16.gmra.mrb[0].mxu0 %v1870
  %v1906 = vpop.f32.mrb[0].mxu0
  %v1907 = vadd.f32 %v1867, %v1906
  %v1908 = vpop.f32.mrb[0].mxu0
  %v1909 = vadd.f32 %v1867, %v1908
  %v1910 = vpop.f32.mrb[0].mxu0
  %v1911 = vpop.f32.mrb[0].mxu0
  %1912 = vdwg.mxu0
  %1913 = vmatprep.subr.bf16.mxu0 %v1833
  %1914 = vmatpush1.bf16.msra.mxu0 %v1832
  %1915 = vmatprep.subr.bf16.mxu0 %v1841
  %1916 = vmatpush1.bf16.msra.mxu0 %v1840
  %1917 = vmatprep.subr.bf16.mxu0 %v1849
  %1918 = vmatpush1.bf16.msra.mxu0 %v1848
  %1919 = vmatprep.subr.bf16.mxu0 %v1857
  %1920 = vmatpush1.bf16.msra.mxu0 %v1856
  %1921 = vmatprep.subr.bf16.mxu0 0
  %1922 = vmatpush1.bf16.msra.mxu0 0
  %1923 = vmatprep.subr.bf16.mxu0 0
  %1924 = vmatpush1.bf16.msra.mxu0 0
  %1925 = vmatprep.subr.bf16.mxu0 0
  %1926 = vmatpush1.bf16.msra.mxu0 0
  %1927 = vmatprep.subr.bf16.mxu0 0
  %1928 = vmatpush1.bf16.msra.mxu0 0
  %1929 = vmatprep.subr.bf16.mxu0 0
  %1930 = vmatpush1.bf16.msra.mxu0 0
  %1931 = vmatprep.subr.bf16.mxu0 0
  %1932 = vmatpush1.bf16.msra.mxu0 0
  %1933 = vmatprep.subr.bf16.mxu0 0
  %1934 = vmatpush1.bf16.msra.mxu0 0
  %1935 = vmatprep.subr.bf16.mxu0 0
  %1936 = vmatpush1.bf16.msra.mxu0 0
  %1937 = vmatprep.subr.bf16.mxu0 0
  %1938 = vmatpush1.bf16.msra.mxu0 0
  %1939 = vmatprep.subr.bf16.mxu0 0
  %1940 = vmatpush1.bf16.msra.mxu0 0
  %1941 = vmatprep.subr.bf16.mxu0 0
  %1942 = vmatpush1.bf16.msra.mxu0 0
  %1943 = vmatprep.subr.bf16.mxu0 0
  %1944 = vmatpush1.bf16.msra.mxu0 0
  %1945 = vmatprep.mubr.bf16.mxu0 0
  %1946 = vmatmul.mubr.bf16.gmra.mrb[0].mxu0 %v1870
  %v1947 = vpop.f32.mrb[0].mxu0
  %v1948 = vadd.f32 %v1867, %v1947
  %v1949 = vpop.f32.mrb[0].mxu0
  %v1950 = vadd.f32 %v1867, %v1949
  %v1951 = vpop.f32.mrb[0].mxu0
  %v1952 = vpop.f32.mrb[0].mxu0
  %1953 = vdwg.mxu0
  %1954 = vmatprep.subr.bf16.mxu0 %v1835
  %1955 = vmatpush1.bf16.msra.mxu0 %v1834
  %1956 = vmatprep.subr.bf16.mxu0 %v1843
  %1957 = vmatpush1.bf16.msra.mxu0 %v1842
  %1958 = vmatprep.subr.bf16.mxu0 %v1851
  %1959 = vmatpush1.bf16.msra.mxu0 %v1850
  %1960 = vmatprep.subr.bf16.mxu0 %v1859
  %1961 = vmatpush1.bf16.msra.mxu0 %v1858
  %1962 = vmatprep.subr.bf16.mxu0 0
  %1963 = vmatpush1.bf16.msra.mxu0 0
  %1964 = vmatprep.subr.bf16.mxu0 0
  %1965 = vmatpush1.bf16.msra.mxu0 0
  %1966 = vmatprep.subr.bf16.mxu0 0
  %1967 = vmatpush1.bf16.msra.mxu0 0
  %1968 = vmatprep.subr.bf16.mxu0 0
  %1969 = vmatpush1.bf16.msra.mxu0 0
  %1970 = vmatprep.subr.bf16.mxu0 0
  %1971 = vmatpush1.bf16.msra.mxu0 0
  %1972 = vmatprep.subr.bf16.mxu0 0
  %1973 = vmatpush1.bf16.msra.mxu0 0
  %1974 = vmatprep.subr.bf16.mxu0 0
  %1975 = vmatpush1.bf16.msra.mxu0 0
  %1976 = vmatprep.subr.bf16.mxu0 0
  %1977 = vmatpush1.bf16.msra.mxu0 0
  %1978 = vmatprep.subr.bf16.mxu0 0
  %1979 = vmatpush1.bf16.msra.mxu0 0
  %1980 = vmatprep.subr.bf16.mxu0 0
  %1981 = vmatpush1.bf16.msra.mxu0 0
  %1982 = vmatprep.subr.bf16.mxu0 0
  %1983 = vmatpush1.bf16.msra.mxu0 0
  %1984 = vmatprep.subr.bf16.mxu0 0
  %1985 = vmatpush1.bf16.msra.mxu0 0
  %1986 = vmatprep.mubr.bf16.mxu0 0
  %1987 = vmatmul.mubr.bf16.gmra.mrb[0].mxu0 %v1870
  %v1988 = vpop.f32.mrb[0].mxu0
  %v1989 = vadd.f32 %v1867, %v1988
  %v1990 = vpop.f32.mrb[0].mxu0
  %v1991 = vadd.f32 %v1867, %v1990
  %v1992 = vpop.f32.mrb[0].mxu0
  %v1993 = vpop.f32.mrb[0].mxu0
  %1994 = vdwg.mxu0
  %1995 = vmatprep.subr.bf16.mxu0 %v1837
  %1996 = vmatpush1.bf16.msra.mxu0 %v1836
  %1997 = vmatprep.subr.bf16.mxu0 %v1845
  %1998 = vmatpush1.bf16.msra.mxu0 %v1844
  %1999 = vmatprep.subr.bf16.mxu0 %v1853
  %2000 = vmatpush1.bf16.msra.mxu0 %v1852
  %2001 = vmatprep.subr.bf16.mxu0 %v1861
  %2002 = vmatpush1.bf16.msra.mxu0 %v1860
  %2003 = vmatprep.subr.bf16.mxu0 0
  %2004 = vmatpush1.bf16.msra.mxu0 0
  %2005 = vmatprep.subr.bf16.mxu0 0
  %2006 = vmatpush1.bf16.msra.mxu0 0
  %2007 = vmatprep.subr.bf16.mxu0 0
  %2008 = vmatpush1.bf16.msra.mxu0 0
  %2009 = vmatprep.subr.bf16.mxu0 0
  %2010 = vmatpush1.bf16.msra.mxu0 0
  %2011 = vmatprep.subr.bf16.mxu0 0
  %2012 = vmatpush1.bf16.msra.mxu0 0
  %2013 = vmatprep.subr.bf16.mxu0 0
  %2014 = vmatpush1.bf16.msra.mxu0 0
  %2015 = vmatprep.subr.bf16.mxu0 0
  %2016 = vmatpush1.bf16.msra.mxu0 0
  %2017 = vmatprep.subr.bf16.mxu0 0
  %2018 = vmatpush1.bf16.msra.mxu0 0
  %2019 = vmatprep.subr.bf16.mxu0 0
  %2020 = vmatpush1.bf16.msra.mxu0 0
  %2021 = vmatprep.subr.bf16.mxu0 0
  %2022 = vmatpush1.bf16.msra.mxu0 0
  %2023 = vmatprep.subr.bf16.mxu0 0
  %2024 = vmatpush1.bf16.msra.mxu0 0
  %2025 = vmatprep.subr.bf16.mxu0 0
  %2026 = vmatpush1.bf16.msra.mxu0 0
  %2027 = vmatprep.mubr.bf16.mxu0 0
  %2028 = vmatmul.mubr.bf16.gmra.mrb[0].mxu0 %v1870
  %v2029 = vpop.f32.mrb[0].mxu0
  %v2030 = vadd.f32 %v1867, %v2029
  %v2031 = vpop.f32.mrb[0].mxu0
  %v2032 = vadd.f32 %v1867, %v2031
  %v2033 = vpop.f32.mrb[0].mxu0
  %v2034 = vpop.f32.mrb[0].mxu0
  %2035 = vdwg.mxu0
  %v2044 = vcombine.low %v1907, %v1909
  %v2045 = vcombine.low %v1948, %v1950
  %v2046 = vcombine.low %v1989, %v1991
  %v2047 = vcombine.low %v2030, %v2032
  %v2049 = vunpack.c.l.s4 1966171168
  %v2050 = vunpack.c.0.s8 %v2049
  %v2051 = vlaneseq
  %v2052 = vshrl.u32 %v2051, 7
  %v2053 = vsub.s32 %v2050, %v2052
  %v2054 = vrot.slane %v2044, %v2053
  %v2056 = vunpack.c.l.s4 1966171168
  %v2057 = vunpack.c.0.s8 %v2056
  %v2058 = vlaneseq
  %v2059 = vshrl.u32 %v2058, 7
  %v2060 = vsub.s32 %v2057, %v2059
  %v2061 = vrot.slane %v2045, %v2060
  %v2063 = vunpack.c.l.s4 1966171168
  %v2064 = vunpack.c.0.s8 %v2063
  %v2065 = vlaneseq
  %v2066 = vshrl.u32 %v2065, 7
  %v2067 = vsub.s32 %v2064, %v2066
  %v2068 = vrot.slane %v2046, %v2067
  %v2070 = vunpack.c.l.s4 1966171168
  %v2071 = vunpack.c.0.s8 %v2070
  %v2072 = vlaneseq
  %v2073 = vshrl.u32 %v2072, 7
  %v2074 = vsub.s32 %v2071, %v2073
  %v2075 = vrot.slane %v2047, %v2074
  %v2076 = vcombine.low %v2054, %v2061
  %v2077 = vcombine.low %v2068, %v2075
  %v2079 = vunpack.c.l.s4 1966171168
  %v2080 = vunpack.c.0.s8 %v2079
  %v2081 = vlaneseq
  %v2082 = vshrl.u32 %v2081, 7
  %v2083 = vsub.s32 %v2080, %v2082
  %v2084 = vrot.slane %v2076, %v2083
  %v2086 = vunpack.c.l.s4 1966171168
  %v2087 = vunpack.c.0.s8 %v2086
  %v2088 = vlaneseq
  %v2089 = vshrl.u32 %v2088, 7
  %v2090 = vsub.s32 %v2087, %v2089
  %v2091 = vrot.slane %v2077, %v2090
  %v2092 = vcombine.low %v2084, %v2091
  %2094 = vst [vmem:[%s9] sm:$0xff] %v2092
  // Predicated region
  $region38: #{mynet_forward.1} parent=0 // pred_check
    _
  $region39: #{mynet_forward.1} parent=0 // pred_check_branch
    %2096 = sbr.rel (0) target = $region41
  $region40: #{mynet_forward.1} parent=0 // pred_region
    _
  $region41: #{mynet_forward.1} parent=0 // pred_fallthru
    _
  // Predicated region
  $region42: #{mynet_forward.1} parent=0 // pred_check
    _
  $region43: #{mynet_forward.1} parent=0 // pred_check_branch
    %2098 = sbr.rel (0) target = $region45
  $region44: #{mynet_forward.1} parent=0 // pred_region
    _
  $region45: #{mynet_forward.1} parent=0 // pred_fallthru
    _

</llo_original>
